<compile_context>
chip_gen: v7x
topology: tpu7x:2x2x1
jax: 0.10.0
libtpu: 0.0.40
codegen_flags: <defaults>
</compile_context>

<pallas_src>
import functools

import jax
import jax.numpy as jnp
from jax.experimental import pallas as pl
from jax.experimental.pallas import tpu as pltpu


def _round_up(x, m):
    return ((x + m - 1) // m) * m


def _make_gru_head_kernel(T, BT, I, Hp):
    """Single-invocation (per batch tile) GRU recurrence + FC/sigmoid head.

    Shapes seen by the kernel:
      x_ref   : (T, BT, I)      time-major input tile (mxu dtype)
      wih_ref : (I, 3*Hp)       W_ih^T, each gate padded to its own 128-lane block
      whh_ref : (Hp, 3*Hp)      W_hh^T, zero-padded rows/cols
      par_ref : (4, 3*Hp) f32   rows = [b_ih ; b_hh ; w_fc|0 ; b_fc|0]
      out_ref : (BT, 2)  f32    [:, 0] = y_out, [:, 1] = y_score
    """
    Hp2 = 2 * Hp
    Hp3 = 3 * Hp

    def kernel(x_ref, wih_ref, whh_ref, par_ref, out_ref):
        # ---- hoisted input projection: one (T*BT, I) @ (I, 3Hp) MXU matmul ----
        # BT % 8 == 0, so merging the leading dims is layout-preserving.
        x2d = x_ref[...].reshape(T * BT, I)
        gi_all = jnp.dot(x2d, wih_ref[...], preferred_element_type=jnp.float32)
        gi_all = gi_all + par_ref[0:1, :]                 # fold b_ih in once

        whh = whh_ref[...]
        mdt = whh.dtype
        # hoist the b_hh broadcast out of the unrolled recurrence
        bhh = jnp.broadcast_to(par_ref[1:2, :], (BT, Hp3))

        # ---- recurrence: fully unrolled, only h@W_hh^T on the serial chain ----
        h = jnp.zeros((BT, Hp), jnp.float32)              # f32 carry; padded lanes stay 0
        for t in range(T):
            gi = gi_all[t * BT:(t + 1) * BT, :]           # sublane-tile aligned view
            gh = jnp.dot(h.astype(mdt), whh,
                         preferred_element_type=jnp.float32) + bhh
            # r and z share a single sigmoid over the first two 128-lane blocks.
            rz = jax.nn.sigmoid(gi[:, :Hp2] + gh[:, :Hp2])
            r = rz[:, :Hp]
            z = rz[:, Hp:]
            n = jnp.tanh(gi[:, Hp2:] + r * gh[:, Hp2:])
            h = (1.0 - z) * n + z * h

        # ---- Linear(H, 1) + sigmoid head as a lane reduction (no N=1 matmul) ----
        w_row = par_ref[2:3, :Hp]                         # (1, Hp), zeros beyond H
        y = jnp.sum(h * w_row, axis=-1, keepdims=True) + par_ref[3:4, 0:1]
        out_ref[:, 0:1] = y.astype(out_ref.dtype)
        out_ref[:, 1:2] = jax.nn.sigmoid(y).astype(out_ref.dtype)

    return kernel


@functools.partial(jax.jit, static_argnames=("mxu_dtype",))
def rnn_forward(x, w_ih, w_hh, b_ih, b_hh, w_fc, b_fc, mxu_dtype=jnp.bfloat16):
    """x: (B, T, I) batch_first (PyTorch layout). Weights in PyTorch layout:
       w_ih (3H, I), w_hh (3H, H), b_ih (3H,), b_hh (3H,), w_fc (1, H), b_fc (1,).
       Returns (y_out, y_score), each (B, 1).

       mxu_dtype (default bf16) applies only to the matmul operands; the h carry,
       gate elementwise math and accumulation stay float32 on every generation."""
    B, T, I = x.shape
    H = w_hh.shape[1]                       # w_hh is (3H, H) in PyTorch layout
    Hp = _round_up(H, 128)                  # each gate padded to its own lane block
    Hp3 = 3 * Hp
    f32 = jnp.float32

    # batch padding / tiling: batch grid axis -> both TCs on v7x for large B
    B8 = _round_up(B, 8)
    BT = B8 if B8 <= 256 else 256
    Bp = _round_up(B, BT)
    n_bb = Bp // BT

    # ---- gate-aligned weight packing (each gate owns a 128-lane block) ---------
    wih3 = jnp.transpose(w_ih.reshape(3, H, I), (0, 2, 1))          # (3, I, H)
    wih3 = jnp.pad(wih3, ((0, 0), (0, 0), (0, Hp - H)))             # (3, I, Hp)
    wih_p = jnp.transpose(wih3, (1, 0, 2)).reshape(I, Hp3).astype(mxu_dtype)

    whh3 = jnp.transpose(w_hh.reshape(3, H, H), (0, 2, 1))          # (3, Hin, Hout)
    whh3 = jnp.pad(whh3, ((0, 0), (0, Hp - H), (0, Hp - H)))        # (3, Hp, Hp)
    whh_p = jnp.transpose(whh3, (1, 0, 2)).reshape(Hp, Hp3).astype(mxu_dtype)

    # ---- pack all tiny operands into ONE (4, 3*Hp) array -> single entry DMA ---
    bih_row = jnp.pad(b_ih.astype(f32).reshape(3, H),
                      ((0, 0), (0, Hp - H))).reshape(1, Hp3)
    bhh_row = jnp.pad(b_hh.astype(f32).reshape(3, H),
                      ((0, 0), (0, Hp - H))).reshape(1, Hp3)
    wfc_row = jnp.pad(w_fc.astype(f32).reshape(1, H), ((0, 0), (0, Hp3 - H)))
    bfc_row = jnp.pad(b_fc.astype(f32).reshape(1, 1), ((0, 0), (0, Hp3 - 1)))
    params = jnp.concatenate([bih_row, bhh_row, wfc_row, bfc_row], axis=0)

    # ---- time-major, batch-padded input ----------------------------------------
    x_t = jnp.transpose(x, (1, 0, 2))                               # (T, B, I)
    if Bp != B:
        x_t = jnp.pad(x_t, ((0, 0), (0, Bp - B), (0, 0)))
    x_t = x_t.astype(mxu_dtype)                                     # (T, Bp, I)

    kernel = _make_gru_head_kernel(T, BT, I, Hp)

    out = pl.pallas_call(
        kernel,
        out_shape=jax.ShapeDtypeStruct((Bp, 2), jnp.float32),
        grid=(n_bb,),
        in_specs=[
            pl.BlockSpec((T, BT, I), lambda i: (0, i, 0)),
            pl.BlockSpec((I, Hp3), lambda i: (0, 0)),
            pl.BlockSpec((Hp, Hp3), lambda i: (0, 0)),
            pl.BlockSpec((4, Hp3), lambda i: (0, 0)),
        ],
        out_specs=pl.BlockSpec((BT, 2), lambda i: (i, 0)),
        compiler_params=pltpu.CompilerParams(
            dimension_semantics=("parallel",)),
    )(x_t, wih_p, whh_p, params)

    y_out = out[:B, 0:1]
    y_score = out[:B, 1:2]
    return y_out, y_score


def _reference_forward(x, w_ih, w_hh, b_ih, b_hh, w_fc, b_fc):
    """Pure-JAX reference matching torch.nn.GRU semantics (gate order r, z, n)."""
    B, T, I = x.shape
    H = w_hh.shape[1]
    hi_prec = jax.lax.Precision.HIGHEST

    def step(h, x_t):
        gi = jnp.dot(x_t, w_ih.T, precision=hi_prec) + b_ih
        gh = jnp.dot(h, w_hh.T, precision=hi_prec) + b_hh
        i_r, i_z, i_n = gi[:, :H], gi[:, H:2 * H], gi[:, 2 * H:]
        h_r, h_z, h_n = gh[:, :H], gh[:, H:2 * H], gh[:, 2 * H:]
        r = jax.nn.sigmoid(i_r + h_r)
        z = jax.nn.sigmoid(i_z + h_z)
        n = jnp.tanh(i_n + r * h_n)
        h_new = (1.0 - z) * n + z * h
        return h_new, None

    h0 = jnp.zeros((B, H), jnp.float32)
    h_T, _ = jax.lax.scan(step, h0, jnp.transpose(x, (1, 0, 2)))
    y = jnp.dot(h_T, w_fc.T, precision=hi_prec) + b_fc
    return y, jax.nn.sigmoid(y)


if __name__ == "__main__":
    # args.dataset == 'physionet' -> input_size = 35 ; args.rnn_hiddens -> hidden = 32
    B, T, I, H = 2, 8, 35, 32

    key = jax.random.PRNGKey(0)
    ks = jax.random.split(key, 8)
    bound = 1.0 / (H ** 0.5)
    uni = lambda k, shape: jax.random.uniform(k, shape, jnp.float32, -bound, bound)

    x = jax.random.normal(ks[0], (B, T, I), jnp.float32)
    w_ih = uni(ks[1], (3 * H, I))     # GRU weight_ih_l0
    w_hh = uni(ks[2], (3 * H, H))     # GRU weight_hh_l0
    b_ih = uni(ks[3], (3 * H,))       # GRU bias_ih_l0
    b_hh = uni(ks[4], (3 * H,))       # GRU bias_hh_l0
    w_fc = uni(ks[5], (1, H))         # fc_output.weight
    b_fc = uni(ks[6], (1,))           # fc_output.bias

    ref_out, ref_score = _reference_forward(x, w_ih, w_hh, b_ih, b_hh, w_fc, b_fc)

    # Default path: bf16 MXU operands (all generations), f32 gate math / carry.
    y_out, y_score = jax.block_until_ready(
        rnn_forward(x, w_ih, w_hh, b_ih, b_hh, w_fc, b_fc)
    )
    assert y_out.shape == (B, 1) and y_score.shape == (B, 1)
    assert jnp.allclose(y_out, ref_out, atol=5e-2, rtol=5e-2), (y_out, ref_out)
    assert jnp.allclose(y_score, ref_score, atol=5e-2, rtol=5e-2), (y_score, ref_score)

    # Strict f32-MXU path validated tightly against the reference.
    y_out32, y_score32 = jax.block_until_ready(
        rnn_forward(x, w_ih, w_hh, b_ih, b_hh, w_fc, b_fc, mxu_dtype=jnp.float32)
    )
    assert jnp.allclose(y_out32, ref_out, atol=5e-3, rtol=5e-3), (y_out32, ref_out)
    assert jnp.allclose(y_score32, ref_score, atol=5e-3, rtol=5e-3), (y_score32, ref_score)

    print("KERNEL_OK")
</pallas_src>

<mosaic_0001>
module attributes {stable_mosaic.version = 11 : i64} {
  func.func @kernel(%arg0: i32, %arg1: memref<8x8x35xbf16, #tpu.memory_space<vmem>>, %arg2: memref<35x384xbf16, #tpu.memory_space<vmem>>, %arg3: memref<128x384xbf16, #tpu.memory_space<vmem>>, %arg4: memref<4x384xf32, #tpu.memory_space<vmem>>, %arg5: memref<8x2xf32, #tpu.memory_space<vmem>>) attributes {dimension_semantics = [#tpu.dimension_semantics<parallel>], iteration_bounds = array<i64: 1>, scalar_prefetch = 0 : i64, scratch_operands = 0 : i64, tpu.core_type = #tpu.core_type<tc>, window_params = [{transform_indices = @transform_0, window_bounds = array<i64: 8, 8, 35>}, {pipeline_mode = #tpu.pipeline_mode<synchronous>, transform_indices = @transform_1, window_bounds = array<i64: 35, 384>}, {pipeline_mode = #tpu.pipeline_mode<synchronous>, transform_indices = @transform_2, window_bounds = array<i64: 128, 384>}, {pipeline_mode = #tpu.pipeline_mode<synchronous>, transform_indices = @transform_3, window_bounds = array<i64: 4, 384>}, {transform_indices = @transform_4, window_bounds = array<i64: 8, 2>}]} {
    %c0 = arith.constant 0 : index
    %c0_0 = arith.constant 0 : index
    %c0_1 = arith.constant 0 : index
    %0 = vector.load %arg1[%c0, %c0_0, %c0_1] : memref<8x8x35xbf16, #tpu.memory_space<vmem>>, vector<8x8x35xbf16>
    %1 = vector.shape_cast %0 : vector<8x8x35xbf16> to vector<64x35xbf16>
    %c0_2 = arith.constant 0 : index
    %c0_3 = arith.constant 0 : index
    %2 = vector.load %arg2[%c0_2, %c0_3] : memref<35x384xbf16, #tpu.memory_space<vmem>>, vector<35x384xbf16>
    %cst = arith.constant dense<0.000000e+00> : vector<64x384xf32>
    %3 = tpu.matmul %1, %2, %cst {dimension_numbers = #tpu.dot_dimension_numbers<[1], [0], [0], [1], [0, 0, 1, 1], [], []>} : vector<64x35xbf16>, vector<35x384xbf16>, vector<64x384xf32> -> vector<64x384xf32>
    %c0_4 = arith.constant 0 : index
    %c0_5 = arith.constant 0 : index
    %4 = vector.load %arg4[%c0_4, %c0_5] : memref<4x384xf32, #tpu.memory_space<vmem>>, vector<1x384xf32>
    %5 = vector.broadcast %4 : vector<1x384xf32> to vector<64x384xf32>
    %6 = arith.addf %3, %5 : vector<64x384xf32>
    %c0_6 = arith.constant 0 : index
    %c0_7 = arith.constant 0 : index
    %7 = vector.load %arg3[%c0_6, %c0_7] : memref<128x384xbf16, #tpu.memory_space<vmem>>, vector<128x384xbf16>
    %c1 = arith.constant 1 : index
    %c0_8 = arith.constant 0 : index
    %8 = vector.load %arg4[%c1, %c0_8] : memref<4x384xf32, #tpu.memory_space<vmem>>, vector<1x384xf32>
    %9 = vector.shape_cast %8 : vector<1x384xf32> to vector<1x384xf32>
    %10 = vector.broadcast %9 : vector<1x384xf32> to vector<8x384xf32>
    %cst_9 = arith.constant 0.000000e+00 : f32
    %11 = vector.broadcast %cst_9 : f32 to vector<8x128xf32>
    %12 = vector.extract_strided_slice %6 {offsets = [0, 0], sizes = [8, 384], strides = [1, 1]} : vector<64x384xf32> to vector<8x384xf32>
    %13 = arith.truncf %11 : vector<8x128xf32> to vector<8x128xbf16>
    %cst_10 = arith.constant dense<0.000000e+00> : vector<8x384xf32>
    %14 = tpu.matmul %13, %7, %cst_10 {dimension_numbers = #tpu.dot_dimension_numbers<[1], [0], [0], [1], [0, 0, 1, 1], [], []>} : vector<8x128xbf16>, vector<128x384xbf16>, vector<8x384xf32> -> vector<8x384xf32>
    %15 = arith.addf %14, %10 : vector<8x384xf32>
    %16 = vector.extract_strided_slice %12 {offsets = [0, 0], sizes = [8, 256], strides = [1, 1]} : vector<8x384xf32> to vector<8x256xf32>
    %17 = vector.extract_strided_slice %15 {offsets = [0, 0], sizes = [8, 256], strides = [1, 1]} : vector<8x384xf32> to vector<8x256xf32>
    %18 = arith.addf %16, %17 : vector<8x256xf32>
    %19 = arith.negf %18 : vector<8x256xf32>
    %20 = math.exp %19 : vector<8x256xf32>
    %cst_11 = arith.constant 1.000000e+00 : f32
    %21 = vector.broadcast %cst_11 : f32 to vector<8x256xf32>
    %22 = arith.addf %21, %20 : vector<8x256xf32>
    %23 = arith.divf %21, %22 : vector<8x256xf32>
    %24 = vector.extract_strided_slice %23 {offsets = [0, 0], sizes = [8, 128], strides = [1, 1]} : vector<8x256xf32> to vector<8x128xf32>
    %25 = vector.extract_strided_slice %23 {offsets = [0, 128], sizes = [8, 128], strides = [1, 1]} : vector<8x256xf32> to vector<8x128xf32>
    %26 = vector.extract_strided_slice %12 {offsets = [0, 256], sizes = [8, 128], strides = [1, 1]} : vector<8x384xf32> to vector<8x128xf32>
    %27 = vector.extract_strided_slice %15 {offsets = [0, 256], sizes = [8, 128], strides = [1, 1]} : vector<8x384xf32> to vector<8x128xf32>
    %28 = arith.mulf %24, %27 : vector<8x128xf32>
    %29 = arith.addf %26, %28 : vector<8x128xf32>
    %30 = math.tanh %29 : vector<8x128xf32>
    %cst_12 = arith.constant 1.000000e+00 : f32
    %31 = vector.broadcast %cst_12 : f32 to vector<8x128xf32>
    %32 = arith.subf %31, %25 : vector<8x128xf32>
    %33 = arith.mulf %32, %30 : vector<8x128xf32>
    %34 = arith.mulf %25, %11 : vector<8x128xf32>
    %35 = arith.addf %33, %34 : vector<8x128xf32>
    %36 = vector.extract_strided_slice %6 {offsets = [8, 0], sizes = [8, 384], strides = [1, 1]} : vector<64x384xf32> to vector<8x384xf32>
    %37 = arith.truncf %35 : vector<8x128xf32> to vector<8x128xbf16>
    %cst_13 = arith.constant dense<0.000000e+00> : vector<8x384xf32>
    %38 = tpu.matmul %37, %7, %cst_13 {dimension_numbers = #tpu.dot_dimension_numbers<[1], [0], [0], [1], [0, 0, 1, 1], [], []>} : vector<8x128xbf16>, vector<128x384xbf16>, vector<8x384xf32> -> vector<8x384xf32>
    %39 = arith.addf %38, %10 : vector<8x384xf32>
    %40 = vector.extract_strided_slice %36 {offsets = [0, 0], sizes = [8, 256], strides = [1, 1]} : vector<8x384xf32> to vector<8x256xf32>
    %41 = vector.extract_strided_slice %39 {offsets = [0, 0], sizes = [8, 256], strides = [1, 1]} : vector<8x384xf32> to vector<8x256xf32>
    %42 = arith.addf %40, %41 : vector<8x256xf32>
    %43 = arith.negf %42 : vector<8x256xf32>
    %44 = math.exp %43 : vector<8x256xf32>
    %cst_14 = arith.constant 1.000000e+00 : f32
    %45 = vector.broadcast %cst_14 : f32 to vector<8x256xf32>
    %46 = arith.addf %45, %44 : vector<8x256xf32>
    %47 = arith.divf %45, %46 : vector<8x256xf32>
    %48 = vector.extract_strided_slice %47 {offsets = [0, 0], sizes = [8, 128], strides = [1, 1]} : vector<8x256xf32> to vector<8x128xf32>
    %49 = vector.extract_strided_slice %47 {offsets = [0, 128], sizes = [8, 128], strides = [1, 1]} : vector<8x256xf32> to vector<8x128xf32>
    %50 = vector.extract_strided_slice %36 {offsets = [0, 256], sizes = [8, 128], strides = [1, 1]} : vector<8x384xf32> to vector<8x128xf32>
    %51 = vector.extract_strided_slice %39 {offsets = [0, 256], sizes = [8, 128], strides = [1, 1]} : vector<8x384xf32> to vector<8x128xf32>
    %52 = arith.mulf %48, %51 : vector<8x128xf32>
    %53 = arith.addf %50, %52 : vector<8x128xf32>
    %54 = math.tanh %53 : vector<8x128xf32>
    %cst_15 = arith.constant 1.000000e+00 : f32
    %55 = vector.broadcast %cst_15 : f32 to vector<8x128xf32>
    %56 = arith.subf %55, %49 : vector<8x128xf32>
    %57 = arith.mulf %56, %54 : vector<8x128xf32>
    %58 = arith.mulf %49, %35 : vector<8x128xf32>
    %59 = arith.addf %57, %58 : vector<8x128xf32>
    %60 = vector.extract_strided_slice %6 {offsets = [16, 0], sizes = [8, 384], strides = [1, 1]} : vector<64x384xf32> to vector<8x384xf32>
    %61 = arith.truncf %59 : vector<8x128xf32> to vector<8x128xbf16>
    %cst_16 = arith.constant dense<0.000000e+00> : vector<8x384xf32>
    %62 = tpu.matmul %61, %7, %cst_16 {dimension_numbers = #tpu.dot_dimension_numbers<[1], [0], [0], [1], [0, 0, 1, 1], [], []>} : vector<8x128xbf16>, vector<128x384xbf16>, vector<8x384xf32> -> vector<8x384xf32>
    %63 = arith.addf %62, %10 : vector<8x384xf32>
    %64 = vector.extract_strided_slice %60 {offsets = [0, 0], sizes = [8, 256], strides = [1, 1]} : vector<8x384xf32> to vector<8x256xf32>
    %65 = vector.extract_strided_slice %63 {offsets = [0, 0], sizes = [8, 256], strides = [1, 1]} : vector<8x384xf32> to vector<8x256xf32>
    %66 = arith.addf %64, %65 : vector<8x256xf32>
    %67 = arith.negf %66 : vector<8x256xf32>
    %68 = math.exp %67 : vector<8x256xf32>
    %cst_17 = arith.constant 1.000000e+00 : f32
    %69 = vector.broadcast %cst_17 : f32 to vector<8x256xf32>
    %70 = arith.addf %69, %68 : vector<8x256xf32>
    %71 = arith.divf %69, %70 : vector<8x256xf32>
    %72 = vector.extract_strided_slice %71 {offsets = [0, 0], sizes = [8, 128], strides = [1, 1]} : vector<8x256xf32> to vector<8x128xf32>
    %73 = vector.extract_strided_slice %71 {offsets = [0, 128], sizes = [8, 128], strides = [1, 1]} : vector<8x256xf32> to vector<8x128xf32>
    %74 = vector.extract_strided_slice %60 {offsets = [0, 256], sizes = [8, 128], strides = [1, 1]} : vector<8x384xf32> to vector<8x128xf32>
    %75 = vector.extract_strided_slice %63 {offsets = [0, 256], sizes = [8, 128], strides = [1, 1]} : vector<8x384xf32> to vector<8x128xf32>
    %76 = arith.mulf %72, %75 : vector<8x128xf32>
    %77 = arith.addf %74, %76 : vector<8x128xf32>
    %78 = math.tanh %77 : vector<8x128xf32>
    %cst_18 = arith.constant 1.000000e+00 : f32
    %79 = vector.broadcast %cst_18 : f32 to vector<8x128xf32>
    %80 = arith.subf %79, %73 : vector<8x128xf32>
    %81 = arith.mulf %80, %78 : vector<8x128xf32>
    %82 = arith.mulf %73, %59 : vector<8x128xf32>
    %83 = arith.addf %81, %82 : vector<8x128xf32>
    %84 = vector.extract_strided_slice %6 {offsets = [24, 0], sizes = [8, 384], strides = [1, 1]} : vector<64x384xf32> to vector<8x384xf32>
    %85 = arith.truncf %83 : vector<8x128xf32> to vector<8x128xbf16>
    %cst_19 = arith.constant dense<0.000000e+00> : vector<8x384xf32>
    %86 = tpu.matmul %85, %7, %cst_19 {dimension_numbers = #tpu.dot_dimension_numbers<[1], [0], [0], [1], [0, 0, 1, 1], [], []>} : vector<8x128xbf16>, vector<128x384xbf16>, vector<8x384xf32> -> vector<8x384xf32>
    %87 = arith.addf %86, %10 : vector<8x384xf32>
    %88 = vector.extract_strided_slice %84 {offsets = [0, 0], sizes = [8, 256], strides = [1, 1]} : vector<8x384xf32> to vector<8x256xf32>
    %89 = vector.extract_strided_slice %87 {offsets = [0, 0], sizes = [8, 256], strides = [1, 1]} : vector<8x384xf32> to vector<8x256xf32>
    %90 = arith.addf %88, %89 : vector<8x256xf32>
    %91 = arith.negf %90 : vector<8x256xf32>
    %92 = math.exp %91 : vector<8x256xf32>
    %cst_20 = arith.constant 1.000000e+00 : f32
    %93 = vector.broadcast %cst_20 : f32 to vector<8x256xf32>
    %94 = arith.addf %93, %92 : vector<8x256xf32>
    %95 = arith.divf %93, %94 : vector<8x256xf32>
    %96 = vector.extract_strided_slice %95 {offsets = [0, 0], sizes = [8, 128], strides = [1, 1]} : vector<8x256xf32> to vector<8x128xf32>
    %97 = vector.extract_strided_slice %95 {offsets = [0, 128], sizes = [8, 128], strides = [1, 1]} : vector<8x256xf32> to vector<8x128xf32>
    %98 = vector.extract_strided_slice %84 {offsets = [0, 256], sizes = [8, 128], strides = [1, 1]} : vector<8x384xf32> to vector<8x128xf32>
    %99 = vector.extract_strided_slice %87 {offsets = [0, 256], sizes = [8, 128], strides = [1, 1]} : vector<8x384xf32> to vector<8x128xf32>
    %100 = arith.mulf %96, %99 : vector<8x128xf32>
    %101 = arith.addf %98, %100 : vector<8x128xf32>
    %102 = math.tanh %101 : vector<8x128xf32>
    %cst_21 = arith.constant 1.000000e+00 : f32
    %103 = vector.broadcast %cst_21 : f32 to vector<8x128xf32>
    %104 = arith.subf %103, %97 : vector<8x128xf32>
    %105 = arith.mulf %104, %102 : vector<8x128xf32>
    %106 = arith.mulf %97, %83 : vector<8x128xf32>
    %107 = arith.addf %105, %106 : vector<8x128xf32>
    %108 = vector.extract_strided_slice %6 {offsets = [32, 0], sizes = [8, 384], strides = [1, 1]} : vector<64x384xf32> to vector<8x384xf32>
    %109 = arith.truncf %107 : vector<8x128xf32> to vector<8x128xbf16>
    %cst_22 = arith.constant dense<0.000000e+00> : vector<8x384xf32>
    %110 = tpu.matmul %109, %7, %cst_22 {dimension_numbers = #tpu.dot_dimension_numbers<[1], [0], [0], [1], [0, 0, 1, 1], [], []>} : vector<8x128xbf16>, vector<128x384xbf16>, vector<8x384xf32> -> vector<8x384xf32>
    %111 = arith.addf %110, %10 : vector<8x384xf32>
    %112 = vector.extract_strided_slice %108 {offsets = [0, 0], sizes = [8, 256], strides = [1, 1]} : vector<8x384xf32> to vector<8x256xf32>
    %113 = vector.extract_strided_slice %111 {offsets = [0, 0], sizes = [8, 256], strides = [1, 1]} : vector<8x384xf32> to vector<8x256xf32>
    %114 = arith.addf %112, %113 : vector<8x256xf32>
    %115 = arith.negf %114 : vector<8x256xf32>
    %116 = math.exp %115 : vector<8x256xf32>
    %cst_23 = arith.constant 1.000000e+00 : f32
    %117 = vector.broadcast %cst_23 : f32 to vector<8x256xf32>
    %118 = arith.addf %117, %116 : vector<8x256xf32>
    %119 = arith.divf %117, %118 : vector<8x256xf32>
    %120 = vector.extract_strided_slice %119 {offsets = [0, 0], sizes = [8, 128], strides = [1, 1]} : vector<8x256xf32> to vector<8x128xf32>
    %121 = vector.extract_strided_slice %119 {offsets = [0, 128], sizes = [8, 128], strides = [1, 1]} : vector<8x256xf32> to vector<8x128xf32>
    %122 = vector.extract_strided_slice %108 {offsets = [0, 256], sizes = [8, 128], strides = [1, 1]} : vector<8x384xf32> to vector<8x128xf32>
    %123 = vector.extract_strided_slice %111 {offsets = [0, 256], sizes = [8, 128], strides = [1, 1]} : vector<8x384xf32> to vector<8x128xf32>
    %124 = arith.mulf %120, %123 : vector<8x128xf32>
    %125 = arith.addf %122, %124 : vector<8x128xf32>
    %126 = math.tanh %125 : vector<8x128xf32>
    %cst_24 = arith.constant 1.000000e+00 : f32
    %127 = vector.broadcast %cst_24 : f32 to vector<8x128xf32>
    %128 = arith.subf %127, %121 : vector<8x128xf32>
    %129 = arith.mulf %128, %126 : vector<8x128xf32>
    %130 = arith.mulf %121, %107 : vector<8x128xf32>
    %131 = arith.addf %129, %130 : vector<8x128xf32>
    %132 = vector.extract_strided_slice %6 {offsets = [40, 0], sizes = [8, 384], strides = [1, 1]} : vector<64x384xf32> to vector<8x384xf32>
    %133 = arith.truncf %131 : vector<8x128xf32> to vector<8x128xbf16>
    %cst_25 = arith.constant dense<0.000000e+00> : vector<8x384xf32>
    %134 = tpu.matmul %133, %7, %cst_25 {dimension_numbers = #tpu.dot_dimension_numbers<[1], [0], [0], [1], [0, 0, 1, 1], [], []>} : vector<8x128xbf16>, vector<128x384xbf16>, vector<8x384xf32> -> vector<8x384xf32>
    %135 = arith.addf %134, %10 : vector<8x384xf32>
    %136 = vector.extract_strided_slice %132 {offsets = [0, 0], sizes = [8, 256], strides = [1, 1]} : vector<8x384xf32> to vector<8x256xf32>
    %137 = vector.extract_strided_slice %135 {offsets = [0, 0], sizes = [8, 256], strides = [1, 1]} : vector<8x384xf32> to vector<8x256xf32>
    %138 = arith.addf %136, %137 : vector<8x256xf32>
    %139 = arith.negf %138 : vector<8x256xf32>
    %140 = math.exp %139 : vector<8x256xf32>
    %cst_26 = arith.constant 1.000000e+00 : f32
    %141 = vector.broadcast %cst_26 : f32 to vector<8x256xf32>
    %142 = arith.addf %141, %140 : vector<8x256xf32>
    %143 = arith.divf %141, %142 : vector<8x256xf32>
    %144 = vector.extract_strided_slice %143 {offsets = [0, 0], sizes = [8, 128], strides = [1, 1]} : vector<8x256xf32> to vector<8x128xf32>
    %145 = vector.extract_strided_slice %143 {offsets = [0, 128], sizes = [8, 128], strides = [1, 1]} : vector<8x256xf32> to vector<8x128xf32>
    %146 = vector.extract_strided_slice %132 {offsets = [0, 256], sizes = [8, 128], strides = [1, 1]} : vector<8x384xf32> to vector<8x128xf32>
    %147 = vector.extract_strided_slice %135 {offsets = [0, 256], sizes = [8, 128], strides = [1, 1]} : vector<8x384xf32> to vector<8x128xf32>
    %148 = arith.mulf %144, %147 : vector<8x128xf32>
    %149 = arith.addf %146, %148 : vector<8x128xf32>
    %150 = math.tanh %149 : vector<8x128xf32>
    %cst_27 = arith.constant 1.000000e+00 : f32
    %151 = vector.broadcast %cst_27 : f32 to vector<8x128xf32>
    %152 = arith.subf %151, %145 : vector<8x128xf32>
    %153 = arith.mulf %152, %150 : vector<8x128xf32>
    %154 = arith.mulf %145, %131 : vector<8x128xf32>
    %155 = arith.addf %153, %154 : vector<8x128xf32>
    %156 = vector.extract_strided_slice %6 {offsets = [48, 0], sizes = [8, 384], strides = [1, 1]} : vector<64x384xf32> to vector<8x384xf32>
    %157 = arith.truncf %155 : vector<8x128xf32> to vector<8x128xbf16>
    %cst_28 = arith.constant dense<0.000000e+00> : vector<8x384xf32>
    %158 = tpu.matmul %157, %7, %cst_28 {dimension_numbers = #tpu.dot_dimension_numbers<[1], [0], [0], [1], [0, 0, 1, 1], [], []>} : vector<8x128xbf16>, vector<128x384xbf16>, vector<8x384xf32> -> vector<8x384xf32>
    %159 = arith.addf %158, %10 : vector<8x384xf32>
    %160 = vector.extract_strided_slice %156 {offsets = [0, 0], sizes = [8, 256], strides = [1, 1]} : vector<8x384xf32> to vector<8x256xf32>
    %161 = vector.extract_strided_slice %159 {offsets = [0, 0], sizes = [8, 256], strides = [1, 1]} : vector<8x384xf32> to vector<8x256xf32>
    %162 = arith.addf %160, %161 : vector<8x256xf32>
    %163 = arith.negf %162 : vector<8x256xf32>
    %164 = math.exp %163 : vector<8x256xf32>
    %cst_29 = arith.constant 1.000000e+00 : f32
    %165 = vector.broadcast %cst_29 : f32 to vector<8x256xf32>
    %166 = arith.addf %165, %164 : vector<8x256xf32>
    %167 = arith.divf %165, %166 : vector<8x256xf32>
    %168 = vector.extract_strided_slice %167 {offsets = [0, 0], sizes = [8, 128], strides = [1, 1]} : vector<8x256xf32> to vector<8x128xf32>
    %169 = vector.extract_strided_slice %167 {offsets = [0, 128], sizes = [8, 128], strides = [1, 1]} : vector<8x256xf32> to vector<8x128xf32>
    %170 = vector.extract_strided_slice %156 {offsets = [0, 256], sizes = [8, 128], strides = [1, 1]} : vector<8x384xf32> to vector<8x128xf32>
    %171 = vector.extract_strided_slice %159 {offsets = [0, 256], sizes = [8, 128], strides = [1, 1]} : vector<8x384xf32> to vector<8x128xf32>
    %172 = arith.mulf %168, %171 : vector<8x128xf32>
    %173 = arith.addf %170, %172 : vector<8x128xf32>
    %174 = math.tanh %173 : vector<8x128xf32>
    %cst_30 = arith.constant 1.000000e+00 : f32
    %175 = vector.broadcast %cst_30 : f32 to vector<8x128xf32>
    %176 = arith.subf %175, %169 : vector<8x128xf32>
    %177 = arith.mulf %176, %174 : vector<8x128xf32>
    %178 = arith.mulf %169, %155 : vector<8x128xf32>
    %179 = arith.addf %177, %178 : vector<8x128xf32>
    %180 = vector.extract_strided_slice %6 {offsets = [56, 0], sizes = [8, 384], strides = [1, 1]} : vector<64x384xf32> to vector<8x384xf32>
    %181 = arith.truncf %179 : vector<8x128xf32> to vector<8x128xbf16>
    %cst_31 = arith.constant dense<0.000000e+00> : vector<8x384xf32>
    %182 = tpu.matmul %181, %7, %cst_31 {dimension_numbers = #tpu.dot_dimension_numbers<[1], [0], [0], [1], [0, 0, 1, 1], [], []>} : vector<8x128xbf16>, vector<128x384xbf16>, vector<8x384xf32> -> vector<8x384xf32>
    %183 = arith.addf %182, %10 : vector<8x384xf32>
    %184 = vector.extract_strided_slice %180 {offsets = [0, 0], sizes = [8, 256], strides = [1, 1]} : vector<8x384xf32> to vector<8x256xf32>
    %185 = vector.extract_strided_slice %183 {offsets = [0, 0], sizes = [8, 256], strides = [1, 1]} : vector<8x384xf32> to vector<8x256xf32>
    %186 = arith.addf %184, %185 : vector<8x256xf32>
    %187 = arith.negf %186 : vector<8x256xf32>
    %188 = math.exp %187 : vector<8x256xf32>
    %cst_32 = arith.constant 1.000000e+00 : f32
    %189 = vector.broadcast %cst_32 : f32 to vector<8x256xf32>
    %190 = arith.addf %189, %188 : vector<8x256xf32>
    %191 = arith.divf %189, %190 : vector<8x256xf32>
    %192 = vector.extract_strided_slice %191 {offsets = [0, 0], sizes = [8, 128], strides = [1, 1]} : vector<8x256xf32> to vector<8x128xf32>
    %193 = vector.extract_strided_slice %191 {offsets = [0, 128], sizes = [8, 128], strides = [1, 1]} : vector<8x256xf32> to vector<8x128xf32>
    %194 = vector.extract_strided_slice %180 {offsets = [0, 256], sizes = [8, 128], strides = [1, 1]} : vector<8x384xf32> to vector<8x128xf32>
    %195 = vector.extract_strided_slice %183 {offsets = [0, 256], sizes = [8, 128], strides = [1, 1]} : vector<8x384xf32> to vector<8x128xf32>
    %196 = arith.mulf %192, %195 : vector<8x128xf32>
    %197 = arith.addf %194, %196 : vector<8x128xf32>
    %198 = math.tanh %197 : vector<8x128xf32>
    %cst_33 = arith.constant 1.000000e+00 : f32
    %199 = vector.broadcast %cst_33 : f32 to vector<8x128xf32>
    %200 = arith.subf %199, %193 : vector<8x128xf32>
    %201 = arith.mulf %200, %198 : vector<8x128xf32>
    %202 = arith.mulf %193, %179 : vector<8x128xf32>
    %203 = arith.addf %201, %202 : vector<8x128xf32>
    %c2 = arith.constant 2 : index
    %c0_34 = arith.constant 0 : index
    %204 = vector.load %arg4[%c2, %c0_34] : memref<4x384xf32, #tpu.memory_space<vmem>>, vector<1x128xf32>
    %205 = vector.broadcast %204 : vector<1x128xf32> to vector<8x128xf32>
    %206 = arith.mulf %203, %205 : vector<8x128xf32>
    %cst_35 = arith.constant dense<0.000000e+00> : vector<8xf32>
    %207 = vector.multi_reduction <add>, %206, %cst_35 [1] : vector<8x128xf32> to vector<8xf32>
    %208 = vector.shape_cast %207 : vector<8xf32> to vector<8x1xf32>
    %c3 = arith.constant 3 : index
    %c0_36 = arith.constant 0 : index
    %209 = vector.load %arg4[%c3, %c0_36] : memref<4x384xf32, #tpu.memory_space<vmem>>, vector<1x1xf32>
    %210 = vector.broadcast %209 : vector<1x1xf32> to vector<8x1xf32>
    %211 = arith.addf %208, %210 : vector<8x1xf32>
    %c0_37 = arith.constant 0 : index
    %c0_38 = arith.constant 0 : index
    %212 = vector.load %arg5[%c0_37, %c0_38] : memref<8x2xf32, #tpu.memory_space<vmem>>, vector<8x1xf32>
    tpu.vector_store %arg5[%c0_37, %c0_38], %211 {strides = array<i32>} : memref<8x2xf32, #tpu.memory_space<vmem>>, vector<8x1xf32>,
    %213 = arith.negf %211 : vector<8x1xf32>
    %214 = math.exp %213 : vector<8x1xf32>
    %cst_39 = arith.constant 1.000000e+00 : f32
    %215 = vector.broadcast %cst_39 : f32 to vector<8x1xf32>
    %216 = arith.addf %215, %214 : vector<8x1xf32>
    %217 = arith.divf %215, %216 : vector<8x1xf32>
    %c0_40 = arith.constant 0 : index
    %c1_41 = arith.constant 1 : index
    %218 = vector.load %arg5[%c0_40, %c1_41] : memref<8x2xf32, #tpu.memory_space<vmem>>, vector<8x1xf32>
    tpu.vector_store %arg5[%c0_40, %c1_41], %217 {strides = array<i32>} : memref<8x2xf32, #tpu.memory_space<vmem>>, vector<8x1xf32>,
    return
  }
  func.func @transform_0(%arg0: i32) -> (i32, i32, i32) {
    %c0_i32 = arith.constant 0 : i32
    %c0_i32_0 = arith.constant 0 : i32
    %c0_i32_1 = arith.constant 0 : i32
    return %c0_i32, %arg0, %c0_i32_0 : i32, i32, i32
  }
  func.func @transform_1(%arg0: i32) -> (i32, i32) {
    %c0_i32 = arith.constant 0 : i32
    %c0_i32_0 = arith.constant 0 : i32
    %c0_i32_1 = arith.constant 0 : i32
    return %c0_i32, %c0_i32_0 : i32, i32
  }
  func.func @transform_2(%arg0: i32) -> (i32, i32) {
    %c0_i32 = arith.constant 0 : i32
    %c0_i32_0 = arith.constant 0 : i32
    %c0_i32_1 = arith.constant 0 : i32
    return %c0_i32, %c0_i32_0 : i32, i32
  }
  func.func @transform_3(%arg0: i32) -> (i32, i32) {
    %c0_i32 = arith.constant 0 : i32
    %c0_i32_0 = arith.constant 0 : i32
    %c0_i32_1 = arith.constant 0 : i32
    return %c0_i32, %c0_i32_0 : i32, i32
  }
  func.func @transform_4(%arg0: i32) -> (i32, i32) {
    %c0_i32 = arith.constant 0 : i32
    %c0_i32_0 = arith.constant 0 : i32
    return %arg0, %c0_i32 : i32, i32
  }
}

</mosaic_0001>

<llo_original>
// kernel: rnn_forward.1
$region0: #{rnn_forward.1}
  #allocation0 [shape = 'u32[]', space=smem, size = 0x4, offset = 0x4, fixed_abs, tag = 'smem constant byte address 0x4 - core index']
  #allocation1 [shape = 'u32[144,128]{1,0:T(1,128)}', space=vmem, size = 0x12000, scoped, tag = 'internal scratch']
  %s0 = inlined_call_operand.vmem [shape: bf16[8,8,35], index: 0, kind: input, shape index: {}]
  %s1 = inlined_call_operand.vmem [shape: bf16[35,384], index: 1, kind: input, shape index: {}]
  %s2 = inlined_call_operand.vmem [shape: bf16[128,384], index: 2, kind: input, shape index: {}]
  %s3 = inlined_call_operand.vmem [shape: f32[4,384], index: 3, kind: input, shape index: {}]
  %s4 = inlined_call_operand.vmem [shape: f32[8,2], index: 4, kind: output, shape index: {}]
  %s5 = sld [smem:[#allocation0]]
  $region26: #{rnn_forward.1} parent=0
    _
  %s7 = ssub.s32 1, %s5
  %s8 = scalar_select 0, %s7, %s5
  // Predicated region
  $region2: #{rnn_forward.1} parent=0 // pred_check
    _
  $region3: #{rnn_forward.1} parent=0 // pred_check_branch
    %10 = sbr.rel (0) target = $region5
  $region4: #{rnn_forward.1} parent=0 // pred_region
    _
  $region5: #{rnn_forward.1} parent=0 // pred_fallthru
    _
  // Predicated region
  $region6: #{rnn_forward.1} parent=0 // pred_check
    _
  $region7: #{rnn_forward.1} parent=0 // pred_check_branch
    %12 = sbr.rel (0) target = $region9
  $region8: #{rnn_forward.1} parent=0 // pred_region
    _
  $region9: #{rnn_forward.1} parent=0 // pred_fallthru
    _
  // Predicated region
  $region10: #{rnn_forward.1} parent=0 // pred_check
    _
  $region11: #{rnn_forward.1} parent=0 // pred_check_branch
    %14 = sbr.rel (0) target = $region13
  $region12: #{rnn_forward.1} parent=0 // pred_region
    _
  $region13: #{rnn_forward.1} parent=0 // pred_fallthru
    _
  // Predicated region
  $region14: #{rnn_forward.1} parent=0 // pred_check
    _
  $region15: #{rnn_forward.1} parent=0 // pred_check_branch
    %16 = sbr.rel (0) target = $region17
  $region16: #{rnn_forward.1} parent=0 // pred_region
    _
  $region17: #{rnn_forward.1} parent=0 // pred_fallthru
    _
  %v18 = vld [vmem:[%s0] sm:$0xf]
  %v19 = vld [vmem:[%s0 + $0x4] sm:$0xf]
  %v20 = vld [vmem:[%s0 + $0x8] sm:$0xf]
  %v21 = vld [vmem:[%s0 + $0xc] sm:$0xf]
  %v22 = vld [vmem:[%s0 + $0x10] sm:$0xf]
  %v23 = vld [vmem:[%s0 + $0x14] sm:$0xf]
  %v24 = vld [vmem:[%s0 + $0x18] sm:$0xf]
  %v25 = vld [vmem:[%s0 + $0x1c] sm:$0xf]
  %v26 = vld [vmem:[%s1] sm:$0xff]
  %v27 = vld [vmem:[%s1 + $0x8] sm:$0xf]
  %v28 = vld [vmem:[%s1 + $0xc] sm:$0xff]
  %v29 = vld [vmem:[%s1 + $0x14] sm:$0xf]
  %v30 = vld [vmem:[%s1 + $0x18] sm:$0xff]
  %v31 = vld [vmem:[%s1 + $0x20] sm:$0xf]
  %v32 = vld [vmem:[%s1 + $0x24] sm:$0xff]
  %v33 = vld [vmem:[%s1 + $0x2c] sm:$0xf]
  %v34 = vld [vmem:[%s1 + $0x30] sm:$0x33]
  %v35 = vld [vmem:[%s1 + $0x38] sm:$0x3]
  %v36 = vld [vmem:[%s3] ss:$4 sm:$0x7]
  %v38 = vlaneseq
  %v39 = vshrl.u32 %v38, 7
  %v40 = vsub.s32 0, %v39
  %v41 = vrot.slane %v36, %v40
  %v42 = vlaneseq
  %v43 = vshrl.u32 %v42, 7
  %v44 = vsub.s32 1, %v43
  %v45 = vrot.slane %v36, %v44
  %v46 = vlaneseq
  %v47 = vshrl.u32 %v46, 7
  %v48 = vsub.s32 2, %v47
  %v49 = vrot.slane %v36, %v48
  %v61 = vunpack.c.l.b16 %v18
  %v62 = vunpack.c.l.b16 %v19
  %v63 = vunpack.c.l.b16 %v20
  %v64 = vunpack.c.l.b16 %v21
  %v65 = vunpack.c.l.b16 %v22
  %v66 = vunpack.c.l.b16 %v23
  %v67 = vunpack.c.l.b16 %v24
  %v68 = vunpack.c.l.b16 %v25
  %v69 = vpack.c.b16 %v62, %v61
  %v70 = vpack.c.b16 %v64, %v63
  %v71 = vpack.c.b16 %v66, %v65
  %v72 = vpack.c.b16 %v68, %v67
  %v83 = vunpack.c.l.b16 %v26
  %v84 = vunpack.c.h.b16 %v26
  %v85 = vunpack.c.l.b16 %v27
  %v86 = vunpack.c.l.b16 %v28
  %v87 = vunpack.c.h.b16 %v28
  %v88 = vunpack.c.l.b16 %v29
  %v89 = vunpack.c.l.b16 %v30
  %v90 = vunpack.c.h.b16 %v30
  %v91 = vunpack.c.l.b16 %v31
  %v92 = vunpack.c.l.b16 %v32
  %v93 = vunpack.c.h.b16 %v32
  %v94 = vunpack.c.l.b16 %v33
  %v95 = vunpack.c.l.b16 %v34
  %v96 = vunpack.c.h.b16 %v34
  %v97 = vunpack.c.l.b16 %v35
  %v98 = vpack.c.b16 %v86, %v83
  %v99 = vpack.c.b16 %v87, %v84
  %v100 = vpack.c.b16 %v88, %v85
  %v101 = vpack.c.b16 %v92, %v89
  %v102 = vpack.c.b16 %v93, %v90
  %v103 = vpack.c.b16 %v94, %v91
  %v104 = vpack.c.b16 %v95, %v95
  %v105 = vpack.c.b16 %v96, %v96
  %v106 = vpack.c.b16 %v97, %v97
  %vm113 = vcmask 285696
  %v115 = vsel %vm113, %v69, 0
  %v118 = vsel %vm113, %v70, 0
  %v121 = vsel %vm113, %v71, 0
  %v124 = vsel %vm113, %v72, 0
  %vm126 = vcmask 1040384
  %vm127 = vcmask 1041408
  %v128 = vsel %vm126, 4294967295, 65535
  %v129 = vsel %vm127, %v128, 0
  %v131 = vand.u32 %v104, %v129
  %v134 = vand.u32 %v105, %v129
  %v137 = vand.u32 %v106, %v129
  %139 = vmatprep.subr.bf16.mxu0 %v99
  %140 = vmatpush1.bf16.msra.mxu0 %v98
  %141 = vmatprep.subr.bf16.mxu0 %v102
  %142 = vmatpush1.bf16.msra.mxu0 %v101
  %143 = vmatprep.subr.bf16.mxu0 %v134
  %144 = vmatpush1.bf16.msra.mxu0 %v131
  %145 = vmatprep.subr.bf16.mxu0 0
  %146 = vmatpush1.bf16.msra.mxu0 0
  %147 = vmatprep.subr.bf16.mxu0 0
  %148 = vmatpush1.bf16.msra.mxu0 0
  %149 = vmatprep.subr.bf16.mxu0 0
  %150 = vmatpush1.bf16.msra.mxu0 0
  %151 = vmatprep.subr.bf16.mxu0 0
  %152 = vmatpush1.bf16.msra.mxu0 0
  %153 = vmatprep.subr.bf16.mxu0 0
  %154 = vmatpush1.bf16.msra.mxu0 0
  %155 = vmatprep.subr.bf16.mxu0 0
  %156 = vmatpush1.bf16.msra.mxu0 0
  %157 = vmatprep.subr.bf16.mxu0 0
  %158 = vmatpush1.bf16.msra.mxu0 0
  %159 = vmatprep.subr.bf16.mxu0 0
  %160 = vmatpush1.bf16.msra.mxu0 0
  %161 = vmatprep.subr.bf16.mxu0 0
  %162 = vmatpush1.bf16.msra.mxu0 0
  %163 = vmatprep.subr.bf16.mxu0 0
  %164 = vmatpush1.bf16.msra.mxu0 0
  %165 = vmatprep.subr.bf16.mxu0 0
  %166 = vmatpush1.bf16.msra.mxu0 0
  %167 = vmatprep.subr.bf16.mxu0 0
  %168 = vmatpush1.bf16.msra.mxu0 0
  %169 = vmatprep.subr.bf16.mxu0 0
  %170 = vmatpush1.bf16.msra.mxu0 0
  %171 = vmatprep.mubr.bf16.mxu0 0
  %172 = vmatmul.mubr.bf16.gmra.mrb[0].mxu0 %v115
  %v173 = vpop.f32.mrb[0].mxu0
  %v174 = vadd.f32 %v41, %v173
  %v175 = vpop.f32.mrb[0].mxu0
  %v176 = vadd.f32 %v45, %v175
  %v177 = vpop.f32.mrb[0].mxu0
  %v178 = vadd.f32 %v41, %v177
  %v179 = vpop.f32.mrb[0].mxu0
  %v180 = vadd.f32 %v45, %v179
  %181 = vmatprep.mubr.bf16.mxu0 0
  %182 = vmatmul.mubr.bf16.gmra.mrb[0].mxu0 %v118
  %v183 = vpop.f32.mrb[0].mxu0
  %v184 = vadd.f32 %v41, %v183
  %v185 = vpop.f32.mrb[0].mxu0
  %v186 = vadd.f32 %v45, %v185
  %v187 = vpop.f32.mrb[0].mxu0
  %v188 = vadd.f32 %v41, %v187
  %v189 = vpop.f32.mrb[0].mxu0
  %v190 = vadd.f32 %v45, %v189
  %191 = vmatprep.mubr.bf16.mxu0 0
  %192 = vmatmul.mubr.bf16.gmra.mrb[0].mxu0 %v121
  %v193 = vpop.f32.mrb[0].mxu0
  %v194 = vadd.f32 %v41, %v193
  %v195 = vpop.f32.mrb[0].mxu0
  %v196 = vadd.f32 %v45, %v195
  %v197 = vpop.f32.mrb[0].mxu0
  %v198 = vadd.f32 %v41, %v197
  %v199 = vpop.f32.mrb[0].mxu0
  %v200 = vadd.f32 %v45, %v199
  %201 = vmatprep.mubr.bf16.mxu0 0
  %202 = vmatmul.mubr.bf16.gmra.mrb[0].mxu0 %v124
  %v203 = vpop.f32.mrb[0].mxu0
  %v204 = vadd.f32 %v41, %v203
  %v205 = vpop.f32.mrb[0].mxu0
  %v206 = vadd.f32 %v45, %v205
  %v207 = vpop.f32.mrb[0].mxu0
  %v208 = vadd.f32 %v41, %v207
  %v209 = vpop.f32.mrb[0].mxu0
  %v210 = vadd.f32 %v45, %v209
  %211 = vdwg.mxu0
  %212 = vmatprep.subr.bf16.mxu0 0
  %213 = vmatpush1.bf16.msra.mxu0 %v100
  %214 = vmatprep.subr.bf16.mxu0 0
  %215 = vmatpush1.bf16.msra.mxu0 %v103
  %216 = vmatprep.subr.bf16.mxu0 0
  %217 = vmatpush1.bf16.msra.mxu0 %v137
  %218 = vmatprep.subr.bf16.mxu0 0
  %219 = vmatpush1.bf16.msra.mxu0 0
  %220 = vmatprep.subr.bf16.mxu0 0
  %221 = vmatpush1.bf16.msra.mxu0 0
  %222 = vmatprep.subr.bf16.mxu0 0
  %223 = vmatpush1.bf16.msra.mxu0 0
  %224 = vmatprep.subr.bf16.mxu0 0
  %225 = vmatpush1.bf16.msra.mxu0 0
  %226 = vmatprep.subr.bf16.mxu0 0
  %227 = vmatpush1.bf16.msra.mxu0 0
  %228 = vmatprep.subr.bf16.mxu0 0
  %229 = vmatpush1.bf16.msra.mxu0 0
  %230 = vmatprep.subr.bf16.mxu0 0
  %231 = vmatpush1.bf16.msra.mxu0 0
  %232 = vmatprep.subr.bf16.mxu0 0
  %233 = vmatpush1.bf16.msra.mxu0 0
  %234 = vmatprep.subr.bf16.mxu0 0
  %235 = vmatpush1.bf16.msra.mxu0 0
  %236 = vmatprep.subr.bf16.mxu0 0
  %237 = vmatpush1.bf16.msra.mxu0 0
  %238 = vmatprep.subr.bf16.mxu0 0
  %239 = vmatpush1.bf16.msra.mxu0 0
  %240 = vmatprep.subr.bf16.mxu0 0
  %241 = vmatpush1.bf16.msra.mxu0 0
  %242 = vmatprep.subr.bf16.mxu0 0
  %243 = vmatpush1.bf16.msra.mxu0 0
  %244 = vmatprep.mubr.bf16.mxu0 0
  %245 = vmatmul.mubr.bf16.gmra.mrb[0].mxu0 %v115
  %v246 = vpop.f32.mrb[0].mxu0
  %v247 = vadd.f32 %v49, %v246
  %v248 = vpop.f32.mrb[0].mxu0
  %v249 = vpop.f32.mrb[0].mxu0
  %v250 = vadd.f32 %v49, %v249
  %v251 = vpop.f32.mrb[0].mxu0
  %252 = vmatprep.mubr.bf16.mxu0 0
  %253 = vmatmul.mubr.bf16.gmra.mrb[0].mxu0 %v118
  %v254 = vpop.f32.mrb[0].mxu0
  %v255 = vadd.f32 %v49, %v254
  %v256 = vpop.f32.mrb[0].mxu0
  %v257 = vpop.f32.mrb[0].mxu0
  %v258 = vadd.f32 %v49, %v257
  %v259 = vpop.f32.mrb[0].mxu0
  %260 = vmatprep.mubr.bf16.mxu0 0
  %261 = vmatmul.mubr.bf16.gmra.mrb[0].mxu0 %v121
  %v262 = vpop.f32.mrb[0].mxu0
  %v263 = vadd.f32 %v49, %v262
  %v264 = vpop.f32.mrb[0].mxu0
  %v265 = vpop.f32.mrb[0].mxu0
  %v266 = vadd.f32 %v49, %v265
  %v267 = vpop.f32.mrb[0].mxu0
  %268 = vmatprep.mubr.bf16.mxu0 0
  %269 = vmatmul.mubr.bf16.gmra.mrb[0].mxu0 %v124
  %v270 = vpop.f32.mrb[0].mxu0
  %v271 = vadd.f32 %v49, %v270
  %v272 = vpop.f32.mrb[0].mxu0
  %v273 = vpop.f32.mrb[0].mxu0
  %v274 = vadd.f32 %v49, %v273
  %v275 = vpop.f32.mrb[0].mxu0
  %276 = vdwg.mxu0
  %v277 = vld [vmem:[%s2] sm:$0xff]
  %v278 = vld [vmem:[%s2 + $0x8] sm:$0xf]
  %v279 = vld [vmem:[%s2 + $0xc] sm:$0xff]
  %v280 = vld [vmem:[%s2 + $0x14] sm:$0xf]
  %v281 = vld [vmem:[%s2 + $0x18] sm:$0xff]
  %v282 = vld [vmem:[%s2 + $0x20] sm:$0xf]
  %v283 = vld [vmem:[%s2 + $0x24] sm:$0xff]
  %v284 = vld [vmem:[%s2 + $0x2c] sm:$0xf]
  %v285 = vld [vmem:[%s2 + $0x30] sm:$0xff]
  %v286 = vld [vmem:[%s2 + $0x38] sm:$0xf]
  %v287 = vld [vmem:[%s2 + $0x3c] sm:$0xff]
  %v288 = vld [vmem:[%s2 + $0x44] sm:$0xf]
  %v289 = vld [vmem:[%s2 + $0x48] sm:$0xff]
  %v290 = vld [vmem:[%s2 + $0x50] sm:$0xf]
  %v291 = vld [vmem:[%s2 + $0x54] sm:$0xff]
  %v292 = vld [vmem:[%s2 + $0x5c] sm:$0xf]
  %v293 = vld [vmem:[%s2 + $0x60] sm:$0xff]
  %v294 = vld [vmem:[%s2 + $0x68] sm:$0xf]
  %v295 = vld [vmem:[%s2 + $0x6c] sm:$0xff]
  %v296 = vld [vmem:[%s2 + $0x74] sm:$0xf]
  %v297 = vld [vmem:[%s2 + $0x78] sm:$0xff]
  %v298 = vld [vmem:[%s2 + $0x80] sm:$0xf]
  %v299 = vld [vmem:[%s2 + $0x84] sm:$0xff]
  %v300 = vld [vmem:[%s2 + $0x8c] sm:$0xf]
  %v301 = vld [vmem:[%s2 + $0x90] sm:$0xff]
  %v302 = vld [vmem:[%s2 + $0x98] sm:$0xf]
  %v303 = vld [vmem:[%s2 + $0x9c] sm:$0xff]
  %v304 = vld [vmem:[%s2 + $0xa4] sm:$0xf]
  %v305 = vld [vmem:[%s2 + $0xa8] sm:$0xff]
  %v306 = vld [vmem:[%s2 + $0xb0] sm:$0xf]
  %v307 = vld [vmem:[%s2 + $0xb4] sm:$0xff]
  %v308 = vld [vmem:[%s2 + $0xbc] sm:$0xf]
  %s309 = scalar_lea.vmem %s3, 1
  %v310 = vld [vmem:[%s309] ss:$4 sm:$0x7]
  %v312 = vlaneseq
  %v313 = vshrl.u32 %v312, 7
  %v314 = vsub.s32 0, %v313
  %v315 = vrot.slane %v310, %v314
  %v316 = vlaneseq
  %v317 = vshrl.u32 %v316, 7
  %v318 = vsub.s32 1, %v317
  %v319 = vrot.slane %v310, %v318
  %v320 = vlaneseq
  %v321 = vshrl.u32 %v320, 7
  %v322 = vsub.s32 2, %v321
  %v323 = vrot.slane %v310, %v322
  %v359 = vunpack.c.l.b16 %v277
  %v360 = vunpack.c.h.b16 %v277
  %v361 = vunpack.c.l.b16 %v278
  %v362 = vunpack.c.l.b16 %v279
  %v363 = vunpack.c.h.b16 %v279
  %v364 = vunpack.c.l.b16 %v280
  %v365 = vunpack.c.l.b16 %v281
  %v366 = vunpack.c.h.b16 %v281
  %v367 = vunpack.c.l.b16 %v282
  %v368 = vunpack.c.l.b16 %v283
  %v369 = vunpack.c.h.b16 %v283
  %v370 = vunpack.c.l.b16 %v284
  %v371 = vunpack.c.l.b16 %v285
  %v372 = vunpack.c.h.b16 %v285
  %v373 = vunpack.c.l.b16 %v286
  %v374 = vunpack.c.l.b16 %v287
  %v375 = vunpack.c.h.b16 %v287
  %v376 = vunpack.c.l.b16 %v288
  %v377 = vunpack.c.l.b16 %v289
  %v378 = vunpack.c.h.b16 %v289
  %v379 = vunpack.c.l.b16 %v290
  %v380 = vunpack.c.l.b16 %v291
  %v381 = vunpack.c.h.b16 %v291
  %v382 = vunpack.c.l.b16 %v292
  %v383 = vunpack.c.l.b16 %v293
  %v384 = vunpack.c.h.b16 %v293
  %v385 = vunpack.c.l.b16 %v294
  %v386 = vunpack.c.l.b16 %v295
  %v387 = vunpack.c.h.b16 %v295
  %v388 = vunpack.c.l.b16 %v296
  %v389 = vunpack.c.l.b16 %v297
  %v390 = vunpack.c.h.b16 %v297
  %v391 = vunpack.c.l.b16 %v298
  %v392 = vunpack.c.l.b16 %v299
  %v393 = vunpack.c.h.b16 %v299
  %v394 = vunpack.c.l.b16 %v300
  %v395 = vunpack.c.l.b16 %v301
  %v396 = vunpack.c.h.b16 %v301
  %v397 = vunpack.c.l.b16 %v302
  %v398 = vunpack.c.l.b16 %v303
  %v399 = vunpack.c.h.b16 %v303
  %v400 = vunpack.c.l.b16 %v304
  %v401 = vunpack.c.l.b16 %v305
  %v402 = vunpack.c.h.b16 %v305
  %v403 = vunpack.c.l.b16 %v306
  %v404 = vunpack.c.l.b16 %v307
  %v405 = vunpack.c.h.b16 %v307
  %v406 = vunpack.c.l.b16 %v308
  %v407 = vpack.c.b16 %v362, %v359
  %v408 = vpack.c.b16 %v363, %v360
  %v409 = vpack.c.b16 %v364, %v361
  %v410 = vpack.c.b16 %v368, %v365
  %v411 = vpack.c.b16 %v369, %v366
  %v412 = vpack.c.b16 %v370, %v367
  %v413 = vpack.c.b16 %v374, %v371
  %v414 = vpack.c.b16 %v375, %v372
  %v415 = vpack.c.b16 %v376, %v373
  %v416 = vpack.c.b16 %v380, %v377
  %v417 = vpack.c.b16 %v381, %v378
  %v418 = vpack.c.b16 %v382, %v379
  %v419 = vpack.c.b16 %v386, %v383
  %v420 = vpack.c.b16 %v387, %v384
  %v421 = vpack.c.b16 %v388, %v385
  %v422 = vpack.c.b16 %v392, %v389
  %v423 = vpack.c.b16 %v393, %v390
  %v424 = vpack.c.b16 %v394, %v391
  %v425 = vpack.c.b16 %v398, %v395
  %v426 = vpack.c.b16 %v399, %v396
  %v427 = vpack.c.b16 %v400, %v397
  %v428 = vpack.c.b16 %v404, %v401
  %v429 = vpack.c.b16 %v405, %v402
  %v430 = vpack.c.b16 %v406, %v403
  %455 = vmatprep.subr.bf16.mxu0 %v408
  %456 = vmatpush1.bf16.msra.mxu0 %v407
  %457 = vmatprep.subr.bf16.mxu0 %v411
  %458 = vmatpush1.bf16.msra.mxu0 %v410
  %459 = vmatprep.subr.bf16.mxu0 %v414
  %460 = vmatpush1.bf16.msra.mxu0 %v413
  %461 = vmatprep.subr.bf16.mxu0 %v417
  %462 = vmatpush1.bf16.msra.mxu0 %v416
  %463 = vmatprep.subr.bf16.mxu0 %v420
  %464 = vmatpush1.bf16.msra.mxu0 %v419
  %465 = vmatprep.subr.bf16.mxu0 %v423
  %466 = vmatpush1.bf16.msra.mxu0 %v422
  %467 = vmatprep.subr.bf16.mxu0 %v426
  %468 = vmatpush1.bf16.msra.mxu0 %v425
  %469 = vmatprep.subr.bf16.mxu0 %v429
  %470 = vmatpush1.bf16.msra.mxu0 %v428
  %471 = vmatprep.subr.bf16.mxu0 0
  %472 = vmatpush1.bf16.msra.mxu0 0
  %473 = vmatprep.subr.bf16.mxu0 0
  %474 = vmatpush1.bf16.msra.mxu0 0
  %475 = vmatprep.subr.bf16.mxu0 0
  %476 = vmatpush1.bf16.msra.mxu0 0
  %477 = vmatprep.subr.bf16.mxu0 0
  %478 = vmatpush1.bf16.msra.mxu0 0
  %479 = vmatprep.subr.bf16.mxu0 0
  %480 = vmatpush1.bf16.msra.mxu0 0
  %481 = vmatprep.subr.bf16.mxu0 0
  %482 = vmatpush1.bf16.msra.mxu0 0
  %483 = vmatprep.subr.bf16.mxu0 0
  %484 = vmatpush1.bf16.msra.mxu0 0
  %485 = vmatprep.subr.bf16.mxu0 0
  %486 = vmatpush1.bf16.msra.mxu0 0
  %487 = vmatprep.mubr.bf16.mxu0 0
  %488 = vmatmul.mubr.bf16.gmra.mrb[0].mxu0 0
  %v489 = vpop.f32.mrb[0].mxu0
  %v490 = vadd.f32 %v315, %v489
  %v491 = vpop.f32.mrb[0].mxu0
  %v492 = vadd.f32 %v319, %v491
  %v493 = vpop.f32.mrb[0].mxu0
  %v494 = vpop.f32.mrb[0].mxu0
  %495 = vdwg.mxu0
  %496 = vmatprep.subr.bf16.mxu0 0
  %497 = vmatpush1.bf16.msra.mxu0 %v409
  %498 = vmatprep.subr.bf16.mxu0 0
  %499 = vmatpush1.bf16.msra.mxu0 %v412
  %500 = vmatprep.subr.bf16.mxu0 0
  %501 = vmatpush1.bf16.msra.mxu0 %v415
  %502 = vmatprep.subr.bf16.mxu0 0
  %503 = vmatpush1.bf16.msra.mxu0 %v418
  %504 = vmatprep.subr.bf16.mxu0 0
  %505 = vmatpush1.bf16.msra.mxu0 %v421
  %506 = vmatprep.subr.bf16.mxu0 0
  %507 = vmatpush1.bf16.msra.mxu0 %v424
  %508 = vmatprep.subr.bf16.mxu0 0
  %509 = vmatpush1.bf16.msra.mxu0 %v427
  %510 = vmatprep.subr.bf16.mxu0 0
  %511 = vmatpush1.bf16.msra.mxu0 %v430
  %512 = vmatprep.subr.bf16.mxu0 0
  %513 = vmatpush1.bf16.msra.mxu0 0
  %514 = vmatprep.subr.bf16.mxu0 0
  %515 = vmatpush1.bf16.msra.mxu0 0
  %516 = vmatprep.subr.bf16.mxu0 0
  %517 = vmatpush1.bf16.msra.mxu0 0
  %518 = vmatprep.subr.bf16.mxu0 0
  %519 = vmatpush1.bf16.msra.mxu0 0
  %520 = vmatprep.subr.bf16.mxu0 0
  %521 = vmatpush1.bf16.msra.mxu0 0
  %522 = vmatprep.subr.bf16.mxu0 0
  %523 = vmatpush1.bf16.msra.mxu0 0
  %524 = vmatprep.subr.bf16.mxu0 0
  %525 = vmatpush1.bf16.msra.mxu0 0
  %526 = vmatprep.subr.bf16.mxu0 0
  %527 = vmatpush1.bf16.msra.mxu0 0
  %528 = vmatprep.mubr.bf16.mxu0 0
  %529 = vmatmul.mubr.bf16.gmra.mrb[0].mxu0 0
  %v530 = vpop.f32.mrb[0].mxu0
  %v531 = vadd.f32 %v323, %v530
  %v532 = vpop.f32.mrb[0].mxu0
  %v533 = vpop.f32.mrb[0].mxu0
  %v534 = vpop.f32.mrb[0].mxu0
  %535 = vdwg.mxu0
  %v536 = vadd.f32 %v174, %v490
  %v537 = vadd.f32 %v176, %v492
  %v538 = vxor.u32 %v536, 2147483648
  %v539 = vxor.u32 %v537, 2147483648
  %v540 = vmul.f32 %v538, 1.442695
  %v541 = vpow.pop %v540
  %v542 = vmul.f32 %v539, 1.442695
  %v543 = vpow.pop %v542
  %v544 = vadd.f32 %v541, 1.0
  %v545 = vadd.f32 %v543, 1.0
  %v546 = vrcp.pop %v544
  %v547 = vmul.f32 1.0, %v546
  %v548 = vrcp.pop %v545
  %v549 = vmul.f32 1.0, %v548
  %v550 = vmul.f32 %v547, %v531
  %v551 = vadd.f32 %v247, %v550
  %v552 = vtanh.pop %v551
  %v553 = vsub.f32 1.0, %v549
  %v554 = vmul.f32 %v553, %v552
  %v555 = vmul.f32 %v549, 0.0
  %v556 = vadd.f32 %v554, %v555
  %v557 = vpack.c.bf16 %v556, %v556
  %558 = vmatprep.subr.bf16.mxu0 %v408
  %559 = vmatpush1.bf16.msra.mxu0 %v407
  %560 = vmatprep.subr.bf16.mxu0 %v411
  %561 = vmatpush1.bf16.msra.mxu0 %v410
  %562 = vmatprep.subr.bf16.mxu0 %v414
  %563 = vmatpush1.bf16.msra.mxu0 %v413
  %564 = vmatprep.subr.bf16.mxu0 %v417
  %565 = vmatpush1.bf16.msra.mxu0 %v416
  %566 = vmatprep.subr.bf16.mxu0 %v420
  %567 = vmatpush1.bf16.msra.mxu0 %v419
  %568 = vmatprep.subr.bf16.mxu0 %v423
  %569 = vmatpush1.bf16.msra.mxu0 %v422
  %570 = vmatprep.subr.bf16.mxu0 %v426
  %571 = vmatpush1.bf16.msra.mxu0 %v425
  %572 = vmatprep.subr.bf16.mxu0 %v429
  %573 = vmatpush1.bf16.msra.mxu0 %v428
  %574 = vmatprep.subr.bf16.mxu0 0
  %575 = vmatpush1.bf16.msra.mxu0 0
  %576 = vmatprep.subr.bf16.mxu0 0
  %577 = vmatpush1.bf16.msra.mxu0 0
  %578 = vmatprep.subr.bf16.mxu0 0
  %579 = vmatpush1.bf16.msra.mxu0 0
  %580 = vmatprep.subr.bf16.mxu0 0
  %581 = vmatpush1.bf16.msra.mxu0 0
  %582 = vmatprep.subr.bf16.mxu0 0
  %583 = vmatpush1.bf16.msra.mxu0 0
  %584 = vmatprep.subr.bf16.mxu0 0
  %585 = vmatpush1.bf16.msra.mxu0 0
  %586 = vmatprep.subr.bf16.mxu0 0
  %587 = vmatpush1.bf16.msra.mxu0 0
  %588 = vmatprep.subr.bf16.mxu0 0
  %589 = vmatpush1.bf16.msra.mxu0 0
  %590 = vmatprep.mubr.bf16.mxu0 0
  %591 = vmatmul.mubr.bf16.gmra.mrb[0].mxu0 %v557
  %v592 = vpop.f32.mrb[0].mxu0
  %v593 = vadd.f32 %v315, %v592
  %v594 = vpop.f32.mrb[0].mxu0
  %v595 = vadd.f32 %v319, %v594
  %v596 = vpop.f32.mrb[0].mxu0
  %v597 = vpop.f32.mrb[0].mxu0
  %598 = vdwg.mxu0
  %599 = vmatprep.subr.bf16.mxu0 0
  %600 = vmatpush1.bf16.msra.mxu0 %v409
  %601 = vmatprep.subr.bf16.mxu0 0
  %602 = vmatpush1.bf16.msra.mxu0 %v412
  %603 = vmatprep.subr.bf16.mxu0 0
  %604 = vmatpush1.bf16.msra.mxu0 %v415
  %605 = vmatprep.subr.bf16.mxu0 0
  %606 = vmatpush1.bf16.msra.mxu0 %v418
  %607 = vmatprep.subr.bf16.mxu0 0
  %608 = vmatpush1.bf16.msra.mxu0 %v421
  %609 = vmatprep.subr.bf16.mxu0 0
  %610 = vmatpush1.bf16.msra.mxu0 %v424
  %611 = vmatprep.subr.bf16.mxu0 0
  %612 = vmatpush1.bf16.msra.mxu0 %v427
  %613 = vmatprep.subr.bf16.mxu0 0
  %614 = vmatpush1.bf16.msra.mxu0 %v430
  %615 = vmatprep.subr.bf16.mxu0 0
  %616 = vmatpush1.bf16.msra.mxu0 0
  %617 = vmatprep.subr.bf16.mxu0 0
  %618 = vmatpush1.bf16.msra.mxu0 0
  %619 = vmatprep.subr.bf16.mxu0 0
  %620 = vmatpush1.bf16.msra.mxu0 0
  %621 = vmatprep.subr.bf16.mxu0 0
  %622 = vmatpush1.bf16.msra.mxu0 0
  %623 = vmatprep.subr.bf16.mxu0 0
  %624 = vmatpush1.bf16.msra.mxu0 0
  %625 = vmatprep.subr.bf16.mxu0 0
  %626 = vmatpush1.bf16.msra.mxu0 0
  %627 = vmatprep.subr.bf16.mxu0 0
  %628 = vmatpush1.bf16.msra.mxu0 0
  %629 = vmatprep.subr.bf16.mxu0 0
  %630 = vmatpush1.bf16.msra.mxu0 0
  %631 = vmatprep.mubr.bf16.mxu0 0
  %632 = vmatmul.mubr.bf16.gmra.mrb[0].mxu0 %v557
  %v633 = vpop.f32.mrb[0].mxu0
  %v634 = vadd.f32 %v323, %v633
  %v635 = vpop.f32.mrb[0].mxu0
  %v636 = vpop.f32.mrb[0].mxu0
  %v637 = vpop.f32.mrb[0].mxu0
  %638 = vdwg.mxu0
  %v639 = vadd.f32 %v178, %v593
  %v640 = vadd.f32 %v180, %v595
  %v641 = vxor.u32 %v639, 2147483648
  %v642 = vxor.u32 %v640, 2147483648
  %v643 = vmul.f32 %v641, 1.442695
  %v644 = vpow.pop %v643
  %v645 = vmul.f32 %v642, 1.442695
  %v646 = vpow.pop %v645
  %v647 = vadd.f32 %v644, 1.0
  %v648 = vadd.f32 %v646, 1.0
  %v649 = vrcp.pop %v647
  %v650 = vmul.f32 1.0, %v649
  %v651 = vrcp.pop %v648
  %v652 = vmul.f32 1.0, %v651
  %v653 = vmul.f32 %v650, %v634
  %v654 = vadd.f32 %v250, %v653
  %v655 = vtanh.pop %v654
  %v656 = vsub.f32 1.0, %v652
  %v657 = vmul.f32 %v656, %v655
  %v658 = vmul.f32 %v652, %v556
  %v659 = vadd.f32 %v657, %v658
  %v660 = vpack.c.bf16 %v659, %v659
  %661 = vmatprep.subr.bf16.mxu0 %v408
  %662 = vmatpush1.bf16.msra.mxu0 %v407
  %663 = vmatprep.subr.bf16.mxu0 %v411
  %664 = vmatpush1.bf16.msra.mxu0 %v410
  %665 = vmatprep.subr.bf16.mxu0 %v414
  %666 = vmatpush1.bf16.msra.mxu0 %v413
  %667 = vmatprep.subr.bf16.mxu0 %v417
  %668 = vmatpush1.bf16.msra.mxu0 %v416
  %669 = vmatprep.subr.bf16.mxu0 %v420
  %670 = vmatpush1.bf16.msra.mxu0 %v419
  %671 = vmatprep.subr.bf16.mxu0 %v423
  %672 = vmatpush1.bf16.msra.mxu0 %v422
  %673 = vmatprep.subr.bf16.mxu0 %v426
  %674 = vmatpush1.bf16.msra.mxu0 %v425
  %675 = vmatprep.subr.bf16.mxu0 %v429
  %676 = vmatpush1.bf16.msra.mxu0 %v428
  %677 = vmatprep.subr.bf16.mxu0 0
  %678 = vmatpush1.bf16.msra.mxu0 0
  %679 = vmatprep.subr.bf16.mxu0 0
  %680 = vmatpush1.bf16.msra.mxu0 0
  %681 = vmatprep.subr.bf16.mxu0 0
  %682 = vmatpush1.bf16.msra.mxu0 0
  %683 = vmatprep.subr.bf16.mxu0 0
  %684 = vmatpush1.bf16.msra.mxu0 0
  %685 = vmatprep.subr.bf16.mxu0 0
  %686 = vmatpush1.bf16.msra.mxu0 0
  %687 = vmatprep.subr.bf16.mxu0 0
  %688 = vmatpush1.bf16.msra.mxu0 0
  %689 = vmatprep.subr.bf16.mxu0 0
  %690 = vmatpush1.bf16.msra.mxu0 0
  %691 = vmatprep.subr.bf16.mxu0 0
  %692 = vmatpush1.bf16.msra.mxu0 0
  %693 = vmatprep.mubr.bf16.mxu0 0
  %694 = vmatmul.mubr.bf16.gmra.mrb[0].mxu0 %v660
  %v695 = vpop.f32.mrb[0].mxu0
  %v696 = vadd.f32 %v315, %v695
  %v697 = vpop.f32.mrb[0].mxu0
  %v698 = vadd.f32 %v319, %v697
  %v699 = vpop.f32.mrb[0].mxu0
  %v700 = vpop.f32.mrb[0].mxu0
  %701 = vdwg.mxu0
  %702 = vmatprep.subr.bf16.mxu0 0
  %703 = vmatpush1.bf16.msra.mxu0 %v409
  %704 = vmatprep.subr.bf16.mxu0 0
  %705 = vmatpush1.bf16.msra.mxu0 %v412
  %706 = vmatprep.subr.bf16.mxu0 0
  %707 = vmatpush1.bf16.msra.mxu0 %v415
  %708 = vmatprep.subr.bf16.mxu0 0
  %709 = vmatpush1.bf16.msra.mxu0 %v418
  %710 = vmatprep.subr.bf16.mxu0 0
  %711 = vmatpush1.bf16.msra.mxu0 %v421
  %712 = vmatprep.subr.bf16.mxu0 0
  %713 = vmatpush1.bf16.msra.mxu0 %v424
  %714 = vmatprep.subr.bf16.mxu0 0
  %715 = vmatpush1.bf16.msra.mxu0 %v427
  %716 = vmatprep.subr.bf16.mxu0 0
  %717 = vmatpush1.bf16.msra.mxu0 %v430
  %718 = vmatprep.subr.bf16.mxu0 0
  %719 = vmatpush1.bf16.msra.mxu0 0
  %720 = vmatprep.subr.bf16.mxu0 0
  %721 = vmatpush1.bf16.msra.mxu0 0
  %722 = vmatprep.subr.bf16.mxu0 0
  %723 = vmatpush1.bf16.msra.mxu0 0
  %724 = vmatprep.subr.bf16.mxu0 0
  %725 = vmatpush1.bf16.msra.mxu0 0
  %726 = vmatprep.subr.bf16.mxu0 0
  %727 = vmatpush1.bf16.msra.mxu0 0
  %728 = vmatprep.subr.bf16.mxu0 0
  %729 = vmatpush1.bf16.msra.mxu0 0
  %730 = vmatprep.subr.bf16.mxu0 0
  %731 = vmatpush1.bf16.msra.mxu0 0
  %732 = vmatprep.subr.bf16.mxu0 0
  %733 = vmatpush1.bf16.msra.mxu0 0
  %734 = vmatprep.mubr.bf16.mxu0 0
  %735 = vmatmul.mubr.bf16.gmra.mrb[0].mxu0 %v660
  %v736 = vpop.f32.mrb[0].mxu0
  %v737 = vadd.f32 %v323, %v736
  %v738 = vpop.f32.mrb[0].mxu0
  %v739 = vpop.f32.mrb[0].mxu0
  %v740 = vpop.f32.mrb[0].mxu0
  %741 = vdwg.mxu0
  %v742 = vadd.f32 %v184, %v696
  %v743 = vadd.f32 %v186, %v698
  %v744 = vxor.u32 %v742, 2147483648
  %v745 = vxor.u32 %v743, 2147483648
  %v746 = vmul.f32 %v744, 1.442695
  %v747 = vpow.pop %v746
  %v748 = vmul.f32 %v745, 1.442695
  %v749 = vpow.pop %v748
  %v750 = vadd.f32 %v747, 1.0
  %v751 = vadd.f32 %v749, 1.0
  %v752 = vrcp.pop %v750
  %v753 = vmul.f32 1.0, %v752
  %v754 = vrcp.pop %v751
  %v755 = vmul.f32 1.0, %v754
  %v756 = vmul.f32 %v753, %v737
  %v757 = vadd.f32 %v255, %v756
  %v758 = vtanh.pop %v757
  %v759 = vsub.f32 1.0, %v755
  %v760 = vmul.f32 %v759, %v758
  %v761 = vmul.f32 %v755, %v659
  %v762 = vadd.f32 %v760, %v761
  %v763 = vpack.c.bf16 %v762, %v762
  %764 = vmatprep.subr.bf16.mxu0 %v408
  %765 = vmatpush1.bf16.msra.mxu0 %v407
  %766 = vmatprep.subr.bf16.mxu0 %v411
  %767 = vmatpush1.bf16.msra.mxu0 %v410
  %768 = vmatprep.subr.bf16.mxu0 %v414
  %769 = vmatpush1.bf16.msra.mxu0 %v413
  %770 = vmatprep.subr.bf16.mxu0 %v417
  %771 = vmatpush1.bf16.msra.mxu0 %v416
  %772 = vmatprep.subr.bf16.mxu0 %v420
  %773 = vmatpush1.bf16.msra.mxu0 %v419
  %774 = vmatprep.subr.bf16.mxu0 %v423
  %775 = vmatpush1.bf16.msra.mxu0 %v422
  %776 = vmatprep.subr.bf16.mxu0 %v426
  %777 = vmatpush1.bf16.msra.mxu0 %v425
  %778 = vmatprep.subr.bf16.mxu0 %v429
  %779 = vmatpush1.bf16.msra.mxu0 %v428
  %780 = vmatprep.subr.bf16.mxu0 0
  %781 = vmatpush1.bf16.msra.mxu0 0
  %782 = vmatprep.subr.bf16.mxu0 0
  %783 = vmatpush1.bf16.msra.mxu0 0
  %784 = vmatprep.subr.bf16.mxu0 0
  %785 = vmatpush1.bf16.msra.mxu0 0
  %786 = vmatprep.subr.bf16.mxu0 0
  %787 = vmatpush1.bf16.msra.mxu0 0
  %788 = vmatprep.subr.bf16.mxu0 0
  %789 = vmatpush1.bf16.msra.mxu0 0
  %790 = vmatprep.subr.bf16.mxu0 0
  %791 = vmatpush1.bf16.msra.mxu0 0
  %792 = vmatprep.subr.bf16.mxu0 0
  %793 = vmatpush1.bf16.msra.mxu0 0
  %794 = vmatprep.subr.bf16.mxu0 0
  %795 = vmatpush1.bf16.msra.mxu0 0
  %796 = vmatprep.mubr.bf16.mxu0 0
  %797 = vmatmul.mubr.bf16.gmra.mrb[0].mxu0 %v763
  %v798 = vpop.f32.mrb[0].mxu0
  %v799 = vadd.f32 %v315, %v798
  %v800 = vpop.f32.mrb[0].mxu0
  %v801 = vadd.f32 %v319, %v800
  %v802 = vpop.f32.mrb[0].mxu0
  %v803 = vpop.f32.mrb[0].mxu0
  %804 = vdwg.mxu0
  %805 = vmatprep.subr.bf16.mxu0 0
  %806 = vmatpush1.bf16.msra.mxu0 %v409
  %807 = vmatprep.subr.bf16.mxu0 0
  %808 = vmatpush1.bf16.msra.mxu0 %v412
  %809 = vmatprep.subr.bf16.mxu0 0
  %810 = vmatpush1.bf16.msra.mxu0 %v415
  %811 = vmatprep.subr.bf16.mxu0 0
  %812 = vmatpush1.bf16.msra.mxu0 %v418
  %813 = vmatprep.subr.bf16.mxu0 0
  %814 = vmatpush1.bf16.msra.mxu0 %v421
  %815 = vmatprep.subr.bf16.mxu0 0
  %816 = vmatpush1.bf16.msra.mxu0 %v424
  %817 = vmatprep.subr.bf16.mxu0 0
  %818 = vmatpush1.bf16.msra.mxu0 %v427
  %819 = vmatprep.subr.bf16.mxu0 0
  %820 = vmatpush1.bf16.msra.mxu0 %v430
  %821 = vmatprep.subr.bf16.mxu0 0
  %822 = vmatpush1.bf16.msra.mxu0 0
  %823 = vmatprep.subr.bf16.mxu0 0
  %824 = vmatpush1.bf16.msra.mxu0 0
  %825 = vmatprep.subr.bf16.mxu0 0
  %826 = vmatpush1.bf16.msra.mxu0 0
  %827 = vmatprep.subr.bf16.mxu0 0
  %828 = vmatpush1.bf16.msra.mxu0 0
  %829 = vmatprep.subr.bf16.mxu0 0
  %830 = vmatpush1.bf16.msra.mxu0 0
  %831 = vmatprep.subr.bf16.mxu0 0
  %832 = vmatpush1.bf16.msra.mxu0 0
  %833 = vmatprep.subr.bf16.mxu0 0
  %834 = vmatpush1.bf16.msra.mxu0 0
  %835 = vmatprep.subr.bf16.mxu0 0
  %836 = vmatpush1.bf16.msra.mxu0 0
  %837 = vmatprep.mubr.bf16.mxu0 0
  %838 = vmatmul.mubr.bf16.gmra.mrb[0].mxu0 %v763
  %v839 = vpop.f32.mrb[0].mxu0
  %v840 = vadd.f32 %v323, %v839
  %v841 = vpop.f32.mrb[0].mxu0
  %v842 = vpop.f32.mrb[0].mxu0
  %v843 = vpop.f32.mrb[0].mxu0
  %844 = vdwg.mxu0
  %v845 = vadd.f32 %v188, %v799
  %v846 = vadd.f32 %v190, %v801
  %v847 = vxor.u32 %v845, 2147483648
  %v848 = vxor.u32 %v846, 2147483648
  %v849 = vmul.f32 %v847, 1.442695
  %v850 = vpow.pop %v849
  %v851 = vmul.f32 %v848, 1.442695
  %v852 = vpow.pop %v851
  %v853 = vadd.f32 %v850, 1.0
  %v854 = vadd.f32 %v852, 1.0
  %v855 = vrcp.pop %v853
  %v856 = vmul.f32 1.0, %v855
  %v857 = vrcp.pop %v854
  %v858 = vmul.f32 1.0, %v857
  %v859 = vmul.f32 %v856, %v840
  %v860 = vadd.f32 %v258, %v859
  %v861 = vtanh.pop %v860
  %v862 = vsub.f32 1.0, %v858
  %v863 = vmul.f32 %v862, %v861
  %v864 = vmul.f32 %v858, %v762
  %v865 = vadd.f32 %v863, %v864
  %v866 = vpack.c.bf16 %v865, %v865
  %867 = vmatprep.subr.bf16.mxu0 %v408
  %868 = vmatpush1.bf16.msra.mxu0 %v407
  %869 = vmatprep.subr.bf16.mxu0 %v411
  %870 = vmatpush1.bf16.msra.mxu0 %v410
  %871 = vmatprep.subr.bf16.mxu0 %v414
  %872 = vmatpush1.bf16.msra.mxu0 %v413
  %873 = vmatprep.subr.bf16.mxu0 %v417
  %874 = vmatpush1.bf16.msra.mxu0 %v416
  %875 = vmatprep.subr.bf16.mxu0 %v420
  %876 = vmatpush1.bf16.msra.mxu0 %v419
  %877 = vmatprep.subr.bf16.mxu0 %v423
  %878 = vmatpush1.bf16.msra.mxu0 %v422
  %879 = vmatprep.subr.bf16.mxu0 %v426
  %880 = vmatpush1.bf16.msra.mxu0 %v425
  %881 = vmatprep.subr.bf16.mxu0 %v429
  %882 = vmatpush1.bf16.msra.mxu0 %v428
  %883 = vmatprep.subr.bf16.mxu0 0
  %884 = vmatpush1.bf16.msra.mxu0 0
  %885 = vmatprep.subr.bf16.mxu0 0
  %886 = vmatpush1.bf16.msra.mxu0 0
  %887 = vmatprep.subr.bf16.mxu0 0
  %888 = vmatpush1.bf16.msra.mxu0 0
  %889 = vmatprep.subr.bf16.mxu0 0
  %890 = vmatpush1.bf16.msra.mxu0 0
  %891 = vmatprep.subr.bf16.mxu0 0
  %892 = vmatpush1.bf16.msra.mxu0 0
  %893 = vmatprep.subr.bf16.mxu0 0
  %894 = vmatpush1.bf16.msra.mxu0 0
  %895 = vmatprep.subr.bf16.mxu0 0
  %896 = vmatpush1.bf16.msra.mxu0 0
  %897 = vmatprep.subr.bf16.mxu0 0
  %898 = vmatpush1.bf16.msra.mxu0 0
  %899 = vmatprep.mubr.bf16.mxu0 0
  %900 = vmatmul.mubr.bf16.gmra.mrb[0].mxu0 %v866
  %v901 = vpop.f32.mrb[0].mxu0
  %v902 = vadd.f32 %v315, %v901
  %v903 = vpop.f32.mrb[0].mxu0
  %v904 = vadd.f32 %v319, %v903
  %v905 = vpop.f32.mrb[0].mxu0
  %v906 = vpop.f32.mrb[0].mxu0
  %907 = vdwg.mxu0
  %908 = vmatprep.subr.bf16.mxu0 0
  %909 = vmatpush1.bf16.msra.mxu0 %v409
  %910 = vmatprep.subr.bf16.mxu0 0
  %911 = vmatpush1.bf16.msra.mxu0 %v412
  %912 = vmatprep.subr.bf16.mxu0 0
  %913 = vmatpush1.bf16.msra.mxu0 %v415
  %914 = vmatprep.subr.bf16.mxu0 0
  %915 = vmatpush1.bf16.msra.mxu0 %v418
  %916 = vmatprep.subr.bf16.mxu0 0
  %917 = vmatpush1.bf16.msra.mxu0 %v421
  %918 = vmatprep.subr.bf16.mxu0 0
  %919 = vmatpush1.bf16.msra.mxu0 %v424
  %920 = vmatprep.subr.bf16.mxu0 0
  %921 = vmatpush1.bf16.msra.mxu0 %v427
  %922 = vmatprep.subr.bf16.mxu0 0
  %923 = vmatpush1.bf16.msra.mxu0 %v430
  %924 = vmatprep.subr.bf16.mxu0 0
  %925 = vmatpush1.bf16.msra.mxu0 0
  %926 = vmatprep.subr.bf16.mxu0 0
  %927 = vmatpush1.bf16.msra.mxu0 0
  %928 = vmatprep.subr.bf16.mxu0 0
  %929 = vmatpush1.bf16.msra.mxu0 0
  %930 = vmatprep.subr.bf16.mxu0 0
  %931 = vmatpush1.bf16.msra.mxu0 0
  %932 = vmatprep.subr.bf16.mxu0 0
  %933 = vmatpush1.bf16.msra.mxu0 0
  %934 = vmatprep.subr.bf16.mxu0 0
  %935 = vmatpush1.bf16.msra.mxu0 0
  %936 = vmatprep.subr.bf16.mxu0 0
  %937 = vmatpush1.bf16.msra.mxu0 0
  %938 = vmatprep.subr.bf16.mxu0 0
  %939 = vmatpush1.bf16.msra.mxu0 0
  %940 = vmatprep.mubr.bf16.mxu0 0
  %941 = vmatmul.mubr.bf16.gmra.mrb[0].mxu0 %v866
  %v942 = vpop.f32.mrb[0].mxu0
  %v943 = vadd.f32 %v323, %v942
  %v944 = vpop.f32.mrb[0].mxu0
  %v945 = vpop.f32.mrb[0].mxu0
  %v946 = vpop.f32.mrb[0].mxu0
  %947 = vdwg.mxu0
  %v948 = vadd.f32 %v194, %v902
  %v949 = vadd.f32 %v196, %v904
  %v950 = vxor.u32 %v948, 2147483648
  %v951 = vxor.u32 %v949, 2147483648
  %v952 = vmul.f32 %v950, 1.442695
  %v953 = vpow.pop %v952
  %v954 = vmul.f32 %v951, 1.442695
  %v955 = vpow.pop %v954
  %v956 = vadd.f32 %v953, 1.0
  %v957 = vadd.f32 %v955, 1.0
  %v958 = vrcp.pop %v956
  %v959 = vmul.f32 1.0, %v958
  %v960 = vrcp.pop %v957
  %v961 = vmul.f32 1.0, %v960
  %v962 = vmul.f32 %v959, %v943
  %v963 = vadd.f32 %v263, %v962
  %v964 = vtanh.pop %v963
  %v965 = vsub.f32 1.0, %v961
  %v966 = vmul.f32 %v965, %v964
  %v967 = vmul.f32 %v961, %v865
  %v968 = vadd.f32 %v966, %v967
  %v969 = vpack.c.bf16 %v968, %v968
  %970 = vmatprep.subr.bf16.mxu0 %v408
  %971 = vmatpush1.bf16.msra.mxu0 %v407
  %972 = vmatprep.subr.bf16.mxu0 %v411
  %973 = vmatpush1.bf16.msra.mxu0 %v410
  %974 = vmatprep.subr.bf16.mxu0 %v414
  %975 = vmatpush1.bf16.msra.mxu0 %v413
  %976 = vmatprep.subr.bf16.mxu0 %v417
  %977 = vmatpush1.bf16.msra.mxu0 %v416
  %978 = vmatprep.subr.bf16.mxu0 %v420
  %979 = vmatpush1.bf16.msra.mxu0 %v419
  %980 = vmatprep.subr.bf16.mxu0 %v423
  %981 = vmatpush1.bf16.msra.mxu0 %v422
  %982 = vmatprep.subr.bf16.mxu0 %v426
  %983 = vmatpush1.bf16.msra.mxu0 %v425
  %984 = vmatprep.subr.bf16.mxu0 %v429
  %985 = vmatpush1.bf16.msra.mxu0 %v428
  %986 = vmatprep.subr.bf16.mxu0 0
  %987 = vmatpush1.bf16.msra.mxu0 0
  %988 = vmatprep.subr.bf16.mxu0 0
  %989 = vmatpush1.bf16.msra.mxu0 0
  %990 = vmatprep.subr.bf16.mxu0 0
  %991 = vmatpush1.bf16.msra.mxu0 0
  %992 = vmatprep.subr.bf16.mxu0 0
  %993 = vmatpush1.bf16.msra.mxu0 0
  %994 = vmatprep.subr.bf16.mxu0 0
  %995 = vmatpush1.bf16.msra.mxu0 0
  %996 = vmatprep.subr.bf16.mxu0 0
  %997 = vmatpush1.bf16.msra.mxu0 0
  %998 = vmatprep.subr.bf16.mxu0 0
  %999 = vmatpush1.bf16.msra.mxu0 0
  %1000 = vmatprep.subr.bf16.mxu0 0
  %1001 = vmatpush1.bf16.msra.mxu0 0
  %1002 = vmatprep.mubr.bf16.mxu0 0
  %1003 = vmatmul.mubr.bf16.gmra.mrb[0].mxu0 %v969
  %v1004 = vpop.f32.mrb[0].mxu0
  %v1005 = vadd.f32 %v315, %v1004
  %v1006 = vpop.f32.mrb[0].mxu0
  %v1007 = vadd.f32 %v319, %v1006
  %v1008 = vpop.f32.mrb[0].mxu0
  %v1009 = vpop.f32.mrb[0].mxu0
  %1010 = vdwg.mxu0
  %1011 = vmatprep.subr.bf16.mxu0 0
  %1012 = vmatpush1.bf16.msra.mxu0 %v409
  %1013 = vmatprep.subr.bf16.mxu0 0
  %1014 = vmatpush1.bf16.msra.mxu0 %v412
  %1015 = vmatprep.subr.bf16.mxu0 0
  %1016 = vmatpush1.bf16.msra.mxu0 %v415
  %1017 = vmatprep.subr.bf16.mxu0 0
  %1018 = vmatpush1.bf16.msra.mxu0 %v418
  %1019 = vmatprep.subr.bf16.mxu0 0
  %1020 = vmatpush1.bf16.msra.mxu0 %v421
  %1021 = vmatprep.subr.bf16.mxu0 0
  %1022 = vmatpush1.bf16.msra.mxu0 %v424
  %1023 = vmatprep.subr.bf16.mxu0 0
  %1024 = vmatpush1.bf16.msra.mxu0 %v427
  %1025 = vmatprep.subr.bf16.mxu0 0
  %1026 = vmatpush1.bf16.msra.mxu0 %v430
  %1027 = vmatprep.subr.bf16.mxu0 0
  %1028 = vmatpush1.bf16.msra.mxu0 0
  %1029 = vmatprep.subr.bf16.mxu0 0
  %1030 = vmatpush1.bf16.msra.mxu0 0
  %1031 = vmatprep.subr.bf16.mxu0 0
  %1032 = vmatpush1.bf16.msra.mxu0 0
  %1033 = vmatprep.subr.bf16.mxu0 0
  %1034 = vmatpush1.bf16.msra.mxu0 0
  %1035 = vmatprep.subr.bf16.mxu0 0
  %1036 = vmatpush1.bf16.msra.mxu0 0
  %1037 = vmatprep.subr.bf16.mxu0 0
  %1038 = vmatpush1.bf16.msra.mxu0 0
  %1039 = vmatprep.subr.bf16.mxu0 0
  %1040 = vmatpush1.bf16.msra.mxu0 0
  %1041 = vmatprep.subr.bf16.mxu0 0
  %1042 = vmatpush1.bf16.msra.mxu0 0
  %1043 = vmatprep.mubr.bf16.mxu0 0
  %1044 = vmatmul.mubr.bf16.gmra.mrb[0].mxu0 %v969
  %v1045 = vpop.f32.mrb[0].mxu0
  %v1046 = vadd.f32 %v323, %v1045
  %v1047 = vpop.f32.mrb[0].mxu0
  %v1048 = vpop.f32.mrb[0].mxu0
  %v1049 = vpop.f32.mrb[0].mxu0
  %1050 = vdwg.mxu0
  %v1051 = vadd.f32 %v198, %v1005
  %v1052 = vadd.f32 %v200, %v1007
  %v1053 = vxor.u32 %v1051, 2147483648
  %v1054 = vxor.u32 %v1052, 2147483648
  %v1055 = vmul.f32 %v1053, 1.442695
  %v1056 = vpow.pop %v1055
  %v1057 = vmul.f32 %v1054, 1.442695
  %v1058 = vpow.pop %v1057
  %v1059 = vadd.f32 %v1056, 1.0
  %v1060 = vadd.f32 %v1058, 1.0
  %v1061 = vrcp.pop %v1059
  %v1062 = vmul.f32 1.0, %v1061
  %v1063 = vrcp.pop %v1060
  %v1064 = vmul.f32 1.0, %v1063
  %v1065 = vmul.f32 %v1062, %v1046
  %v1066 = vadd.f32 %v266, %v1065
  %v1067 = vtanh.pop %v1066
  %v1068 = vsub.f32 1.0, %v1064
  %v1069 = vmul.f32 %v1068, %v1067
  %v1070 = vmul.f32 %v1064, %v968
  %v1071 = vadd.f32 %v1069, %v1070
  %v1072 = vpack.c.bf16 %v1071, %v1071
  %1073 = vmatprep.subr.bf16.mxu0 %v408
  %1074 = vmatpush1.bf16.msra.mxu0 %v407
  %1075 = vmatprep.subr.bf16.mxu0 %v411
  %1076 = vmatpush1.bf16.msra.mxu0 %v410
  %1077 = vmatprep.subr.bf16.mxu0 %v414
  %1078 = vmatpush1.bf16.msra.mxu0 %v413
  %1079 = vmatprep.subr.bf16.mxu0 %v417
  %1080 = vmatpush1.bf16.msra.mxu0 %v416
  %1081 = vmatprep.subr.bf16.mxu0 %v420
  %1082 = vmatpush1.bf16.msra.mxu0 %v419
  %1083 = vmatprep.subr.bf16.mxu0 %v423
  %1084 = vmatpush1.bf16.msra.mxu0 %v422
  %1085 = vmatprep.subr.bf16.mxu0 %v426
  %1086 = vmatpush1.bf16.msra.mxu0 %v425
  %1087 = vmatprep.subr.bf16.mxu0 %v429
  %1088 = vmatpush1.bf16.msra.mxu0 %v428
  %1089 = vmatprep.subr.bf16.mxu0 0
  %1090 = vmatpush1.bf16.msra.mxu0 0
  %1091 = vmatprep.subr.bf16.mxu0 0
  %1092 = vmatpush1.bf16.msra.mxu0 0
  %1093 = vmatprep.subr.bf16.mxu0 0
  %1094 = vmatpush1.bf16.msra.mxu0 0
  %1095 = vmatprep.subr.bf16.mxu0 0
  %1096 = vmatpush1.bf16.msra.mxu0 0
  %1097 = vmatprep.subr.bf16.mxu0 0
  %1098 = vmatpush1.bf16.msra.mxu0 0
  %1099 = vmatprep.subr.bf16.mxu0 0
  %1100 = vmatpush1.bf16.msra.mxu0 0
  %1101 = vmatprep.subr.bf16.mxu0 0
  %1102 = vmatpush1.bf16.msra.mxu0 0
  %1103 = vmatprep.subr.bf16.mxu0 0
  %1104 = vmatpush1.bf16.msra.mxu0 0
  %1105 = vmatprep.mubr.bf16.mxu0 0
  %1106 = vmatmul.mubr.bf16.gmra.mrb[0].mxu0 %v1072
  %v1107 = vpop.f32.mrb[0].mxu0
  %v1108 = vadd.f32 %v315, %v1107
  %v1109 = vpop.f32.mrb[0].mxu0
  %v1110 = vadd.f32 %v319, %v1109
  %v1111 = vpop.f32.mrb[0].mxu0
  %v1112 = vpop.f32.mrb[0].mxu0
  %1113 = vdwg.mxu0
  %1114 = vmatprep.subr.bf16.mxu0 0
  %1115 = vmatpush1.bf16.msra.mxu0 %v409
  %1116 = vmatprep.subr.bf16.mxu0 0
  %1117 = vmatpush1.bf16.msra.mxu0 %v412
  %1118 = vmatprep.subr.bf16.mxu0 0
  %1119 = vmatpush1.bf16.msra.mxu0 %v415
  %1120 = vmatprep.subr.bf16.mxu0 0
  %1121 = vmatpush1.bf16.msra.mxu0 %v418
  %1122 = vmatprep.subr.bf16.mxu0 0
  %1123 = vmatpush1.bf16.msra.mxu0 %v421
  %1124 = vmatprep.subr.bf16.mxu0 0
  %1125 = vmatpush1.bf16.msra.mxu0 %v424
  %1126 = vmatprep.subr.bf16.mxu0 0
  %1127 = vmatpush1.bf16.msra.mxu0 %v427
  %1128 = vmatprep.subr.bf16.mxu0 0
  %1129 = vmatpush1.bf16.msra.mxu0 %v430
  %1130 = vmatprep.subr.bf16.mxu0 0
  %1131 = vmatpush1.bf16.msra.mxu0 0
  %1132 = vmatprep.subr.bf16.mxu0 0
  %1133 = vmatpush1.bf16.msra.mxu0 0
  %1134 = vmatprep.subr.bf16.mxu0 0
  %1135 = vmatpush1.bf16.msra.mxu0 0
  %1136 = vmatprep.subr.bf16.mxu0 0
  %1137 = vmatpush1.bf16.msra.mxu0 0
  %1138 = vmatprep.subr.bf16.mxu0 0
  %1139 = vmatpush1.bf16.msra.mxu0 0
  %1140 = vmatprep.subr.bf16.mxu0 0
  %1141 = vmatpush1.bf16.msra.mxu0 0
  %1142 = vmatprep.subr.bf16.mxu0 0
  %1143 = vmatpush1.bf16.msra.mxu0 0
  %1144 = vmatprep.subr.bf16.mxu0 0
  %1145 = vmatpush1.bf16.msra.mxu0 0
  %1146 = vmatprep.mubr.bf16.mxu0 0
  %1147 = vmatmul.mubr.bf16.gmra.mrb[0].mxu0 %v1072
  %v1148 = vpop.f32.mrb[0].mxu0
  %v1149 = vadd.f32 %v323, %v1148
  %v1150 = vpop.f32.mrb[0].mxu0
  %v1151 = vpop.f32.mrb[0].mxu0
  %v1152 = vpop.f32.mrb[0].mxu0
  %1153 = vdwg.mxu0
  %v1154 = vadd.f32 %v204, %v1108
  %v1155 = vadd.f32 %v206, %v1110
  %v1156 = vxor.u32 %v1154, 2147483648
  %v1157 = vxor.u32 %v1155, 2147483648
  %v1158 = vmul.f32 %v1156, 1.442695
  %v1159 = vpow.pop %v1158
  %v1160 = vmul.f32 %v1157, 1.442695
  %v1161 = vpow.pop %v1160
  %v1162 = vadd.f32 %v1159, 1.0
  %v1163 = vadd.f32 %v1161, 1.0
  %v1164 = vrcp.pop %v1162
  %v1165 = vmul.f32 1.0, %v1164
  %v1166 = vrcp.pop %v1163
  %v1167 = vmul.f32 1.0, %v1166
  %v1168 = vmul.f32 %v1165, %v1149
  %v1169 = vadd.f32 %v271, %v1168
  %v1170 = vtanh.pop %v1169
  %v1171 = vsub.f32 1.0, %v1167
  %v1172 = vmul.f32 %v1171, %v1170
  %v1173 = vmul.f32 %v1167, %v1071
  %v1174 = vadd.f32 %v1172, %v1173
  %v1175 = vpack.c.bf16 %v1174, %v1174
  %1176 = vmatprep.subr.bf16.mxu0 %v408
  %1177 = vmatpush1.bf16.msra.mxu0 %v407
  %1178 = vmatprep.subr.bf16.mxu0 %v411
  %1179 = vmatpush1.bf16.msra.mxu0 %v410
  %1180 = vmatprep.subr.bf16.mxu0 %v414
  %1181 = vmatpush1.bf16.msra.mxu0 %v413
  %1182 = vmatprep.subr.bf16.mxu0 %v417
  %1183 = vmatpush1.bf16.msra.mxu0 %v416
  %1184 = vmatprep.subr.bf16.mxu0 %v420
  %1185 = vmatpush1.bf16.msra.mxu0 %v419
  %1186 = vmatprep.subr.bf16.mxu0 %v423
  %1187 = vmatpush1.bf16.msra.mxu0 %v422
  %1188 = vmatprep.subr.bf16.mxu0 %v426
  %1189 = vmatpush1.bf16.msra.mxu0 %v425
  %1190 = vmatprep.subr.bf16.mxu0 %v429
  %1191 = vmatpush1.bf16.msra.mxu0 %v428
  %1192 = vmatprep.subr.bf16.mxu0 0
  %1193 = vmatpush1.bf16.msra.mxu0 0
  %1194 = vmatprep.subr.bf16.mxu0 0
  %1195 = vmatpush1.bf16.msra.mxu0 0
  %1196 = vmatprep.subr.bf16.mxu0 0
  %1197 = vmatpush1.bf16.msra.mxu0 0
  %1198 = vmatprep.subr.bf16.mxu0 0
  %1199 = vmatpush1.bf16.msra.mxu0 0
  %1200 = vmatprep.subr.bf16.mxu0 0
  %1201 = vmatpush1.bf16.msra.mxu0 0
  %1202 = vmatprep.subr.bf16.mxu0 0
  %1203 = vmatpush1.bf16.msra.mxu0 0
  %1204 = vmatprep.subr.bf16.mxu0 0
  %1205 = vmatpush1.bf16.msra.mxu0 0
  %1206 = vmatprep.subr.bf16.mxu0 0
  %1207 = vmatpush1.bf16.msra.mxu0 0
  %1208 = vmatprep.mubr.bf16.mxu0 0
  %1209 = vmatmul.mubr.bf16.gmra.mrb[0].mxu0 %v1175
  %v1210 = vpop.f32.mrb[0].mxu0
  %v1211 = vadd.f32 %v315, %v1210
  %v1212 = vpop.f32.mrb[0].mxu0
  %v1213 = vadd.f32 %v319, %v1212
  %v1214 = vpop.f32.mrb[0].mxu0
  %v1215 = vpop.f32.mrb[0].mxu0
  %1216 = vdwg.mxu0
  %1217 = vmatprep.subr.bf16.mxu0 0
  %1218 = vmatpush1.bf16.msra.mxu0 %v409
  %1219 = vmatprep.subr.bf16.mxu0 0
  %1220 = vmatpush1.bf16.msra.mxu0 %v412
  %1221 = vmatprep.subr.bf16.mxu0 0
  %1222 = vmatpush1.bf16.msra.mxu0 %v415
  %1223 = vmatprep.subr.bf16.mxu0 0
  %1224 = vmatpush1.bf16.msra.mxu0 %v418
  %1225 = vmatprep.subr.bf16.mxu0 0
  %1226 = vmatpush1.bf16.msra.mxu0 %v421
  %1227 = vmatprep.subr.bf16.mxu0 0
  %1228 = vmatpush1.bf16.msra.mxu0 %v424
  %1229 = vmatprep.subr.bf16.mxu0 0
  %1230 = vmatpush1.bf16.msra.mxu0 %v427
  %1231 = vmatprep.subr.bf16.mxu0 0
  %1232 = vmatpush1.bf16.msra.mxu0 %v430
  %1233 = vmatprep.subr.bf16.mxu0 0
  %1234 = vmatpush1.bf16.msra.mxu0 0
  %1235 = vmatprep.subr.bf16.mxu0 0
  %1236 = vmatpush1.bf16.msra.mxu0 0
  %1237 = vmatprep.subr.bf16.mxu0 0
  %1238 = vmatpush1.bf16.msra.mxu0 0
  %1239 = vmatprep.subr.bf16.mxu0 0
  %1240 = vmatpush1.bf16.msra.mxu0 0
  %1241 = vmatprep.subr.bf16.mxu0 0
  %1242 = vmatpush1.bf16.msra.mxu0 0
  %1243 = vmatprep.subr.bf16.mxu0 0
  %1244 = vmatpush1.bf16.msra.mxu0 0
  %1245 = vmatprep.subr.bf16.mxu0 0
  %1246 = vmatpush1.bf16.msra.mxu0 0
  %1247 = vmatprep.subr.bf16.mxu0 0
  %1248 = vmatpush1.bf16.msra.mxu0 0
  %1249 = vmatprep.mubr.bf16.mxu0 0
  %1250 = vmatmul.mubr.bf16.gmra.mrb[0].mxu0 %v1175
  %v1251 = vpop.f32.mrb[0].mxu0
  %v1252 = vadd.f32 %v323, %v1251
  %v1253 = vpop.f32.mrb[0].mxu0
  %v1254 = vpop.f32.mrb[0].mxu0
  %v1255 = vpop.f32.mrb[0].mxu0
  %1256 = vdwg.mxu0
  %v1257 = vadd.f32 %v208, %v1211
  %v1258 = vadd.f32 %v210, %v1213
  %v1259 = vxor.u32 %v1257, 2147483648
  %v1260 = vxor.u32 %v1258, 2147483648
  %v1261 = vmul.f32 %v1259, 1.442695
  %v1262 = vpow.pop %v1261
  %v1263 = vmul.f32 %v1260, 1.442695
  %v1264 = vpow.pop %v1263
  %v1265 = vadd.f32 %v1262, 1.0
  %v1266 = vadd.f32 %v1264, 1.0
  %v1267 = vrcp.pop %v1265
  %v1268 = vmul.f32 1.0, %v1267
  %v1269 = vrcp.pop %v1266
  %v1270 = vmul.f32 1.0, %v1269
  %v1271 = vmul.f32 %v1268, %v1252
  %v1272 = vadd.f32 %v274, %v1271
  %v1273 = vtanh.pop %v1272
  %v1274 = vsub.f32 1.0, %v1270
  %v1275 = vmul.f32 %v1274, %v1273
  %v1276 = vmul.f32 %v1270, %v1174
  %v1277 = vadd.f32 %v1275, %v1276
  %v1278 = vld [vmem:[%s3 + $0x2] sm:$0x1]
  %v1279 = vlaneseq
  %v1280 = vshrl.u32 %v1279, 7
  %v1281 = vsub.s32 0, %v1280
  %v1282 = vrot.slane %v1278, %v1281
  %v1283 = vmul.f32 %v1277, %v1282
  %1284 = vadd.xlane.f32.xlu0 %v1283
  %v1285 = vpop.xlane.xlu0 %1284
  %v1286 = vld [vmem:[%s3 + $0x3] sm:$0x1]
  %v1287 = vlaneseq
  %v1288 = vshrl.u32 %v1287, 7
  %v1289 = vsub.s32 0, %v1288
  %v1290 = vrot.slane %v1286, %v1289
  %v1291 = vadd.f32 %v1285, %v1290
  %vm1292 = vcmask 7168
  %1293 = vst.msk [vmem:[%s4] sm:$0xff] %vm1292, %v1291
  %v1294 = vxor.u32 %v1291, 2147483648
  %v1295 = vmul.f32 %v1294, 1.442695
  %v1296 = vpow.pop %v1295
  %v1297 = vadd.f32 %v1296, 1.0
  %v1298 = vrcp.pop %v1297
  %v1299 = vmul.f32 1.0, %v1298
  %1301 = vrot.lane.b32.xlu0 %v1299, 1
  %v1302 = vpop.permute.xlu0 %1301
  %vm1304 = vcmask 15368
  %1305 = vst.msk [vmem:[%s4] sm:$0xff] %vm1304, %v1302
  // Predicated region
  $region18: #{rnn_forward.1} parent=0 // pred_check
    _
  $region19: #{rnn_forward.1} parent=0 // pred_check_branch
    %1307 = sbr.rel (0) target = $region21
  $region20: #{rnn_forward.1} parent=0 // pred_region
    _
  $region21: #{rnn_forward.1} parent=0 // pred_fallthru
    _
  // Predicated region
  $region22: #{rnn_forward.1} parent=0 // pred_check
    _
  $region23: #{rnn_forward.1} parent=0 // pred_check_branch
    %1309 = sbr.rel (0) target = $region25
  $region24: #{rnn_forward.1} parent=0 // pred_region
    _
  $region25: #{rnn_forward.1} parent=0 // pred_fallthru
    _

</llo_original>
